<compile_context>
chip_gen: v7x
topology: tpu7x:2x2x1
jax: 0.10.0
libtpu: 0.0.40
codegen_flags: <defaults>
</compile_context>

<pallas_src>
import math
import jax
import jax.numpy as jnp
from jax.experimental import pallas as pl
from jax.experimental.pallas import tpu as pltpu

VOCAB = 100
MAX_POS = 16
D = 128          # hidden size (lane-dense)
H = 4            # attention heads
DH = D // H      # head dim
F = 256          # FFN intermediate size
LAYERS = 2
CLSP = 128       # classifier output padded to full lane width
EPS = 1e-12      # DistilBERT LayerNorm eps


# ------------------------------------------------------------ kernel helpers -

def _layer_norm(x, g, b):
    mu = jnp.mean(x, axis=-1, keepdims=True)
    xc = x - mu
    var = jnp.mean(xc * xc, axis=-1, keepdims=True)
    return xc * jax.lax.rsqrt(var + EPS) * g + b


def _erf(x):
    # Abramowitz & Stegun 7.1.26 polynomial erf (|abs err| < 1.5e-7).  Used so
    # the exact-erf GELU lowers with only exp / mul / select — no lax.erf dep.
    t = 1.0 / (1.0 + 0.3275911 * jnp.abs(x))
    poly = t * (0.254829592 + t * (-0.284496736 + t * (1.421413741
               + t * (-1.453152027 + t * 1.061405429))))
    y = 1.0 - poly * jnp.exp(-x * x)
    return jnp.where(x >= 0.0, y, -y)


def _gelu_exact(x):
    return 0.5 * x * (1.0 + _erf(x * (1.0 / math.sqrt(2.0))))


# ------------------------------------------------------------------- kernel --

def fused_forward_kernel(x_ref, mask_ref, embln_ref,
                         wqkv_ref, bqkv_ref, wo_ref,
                         w1_ref, b1_ref, w2_ref, vecd_ref,
                         clsw_ref, clsb_ref,
                         out_ref, h_scr):
    layer = pl.program_id(1)
    n_layers = pl.num_programs(1)

    # ---- first layer step: embedding LayerNorm into the resident activation --
    @pl.when(layer == 0)
    def _():
        h_scr[...] = _layer_norm(x_ref[0], embln_ref[0:1, :], embln_ref[1:2, :])

    h = h_scr[...]                               # [S, D] f32, resident in VMEM
    seq = h.shape[0]

    vec = vecd_ref[0]                            # [8, D] bias/LN slab
    bo, b2 = vec[0:1, :], vec[1:2, :]
    ln1_g, ln1_b = vec[2:3, :], vec[3:4, :]
    ln2_g, ln2_b = vec[4:5, :], vec[5:6, :]

    # ---- multi-head self-attention, all heads batched ------------------------
    h_bf = h.astype(jnp.bfloat16)
    h_heads = jnp.broadcast_to(h_bf, (H, seq, D))            # tiny replicate
    qkv = jnp.einsum("hsd,hde->hse", h_heads, wqkv_ref[0],
                     preferred_element_type=jnp.float32) + bqkv_ref[0]  # [H,S,3*DH]
    q = qkv[:, :, 0 * DH:1 * DH].astype(jnp.bfloat16)
    k = qkv[:, :, 1 * DH:2 * DH].astype(jnp.bfloat16)
    v = qkv[:, :, 2 * DH:3 * DH].astype(jnp.bfloat16)

    scores = jnp.einsum("hqd,hkd->hqk", q, k,
                        preferred_element_type=jnp.float32) * (1.0 / math.sqrt(DH))
    scores = scores + mask_ref[...]              # additive key-padding mask [1,1,S]
    scores = scores - jnp.max(scores, axis=-1, keepdims=True)
    p = jnp.exp(scores)
    p = p * pl.reciprocal(jnp.sum(p, axis=-1, keepdims=True), approx=True)

    ctx = jnp.einsum("hqk,hkd->hqd", p.astype(jnp.bfloat16), v,
                     preferred_element_type=jnp.float32)                # [H,S,DH]
    proj = jnp.einsum("hqd,hde->hqe", ctx.astype(jnp.bfloat16), wo_ref[0],
                      preferred_element_type=jnp.float32)               # [H,S,D]
    attn = jnp.sum(proj, axis=0) + bo                                   # [S,D]

    sa = _layer_norm(h + attn, ln1_g, ln1_b)

    # ---- FFN (exact-erf GELU, matching HF DistilBERT) ------------------------
    hdn = _gelu_exact(jnp.dot(sa.astype(jnp.bfloat16), w1_ref[0],
                              preferred_element_type=jnp.float32) + b1_ref[0])
    ffn = jnp.dot(hdn.astype(jnp.bfloat16), w2_ref[0],
                  preferred_element_type=jnp.float32) + b2

    h_new = _layer_norm(sa + ffn, ln2_g, ln2_b)
    h_scr[...] = h_new

    # ---- classifier head fused into the last layer ---------------------------
    # self.l2 = Dropout(0.3): identity at inference time.
    # TODO(synk): training-mode dropout (random mask + 1/(1-p) scale) not emitted.
    @pl.when(layer == n_layers - 1)
    def _():
        out_ref[0] = (jnp.dot(h_new.astype(jnp.bfloat16), clsw_ref[...],
                              preferred_element_type=jnp.float32) + clsb_ref[...])


# ------------------------------------------------------------------ wrapper --

def _rep(shape):
    n = len(shape)
    return pl.BlockSpec(shape, lambda b, l: (0,) * n)


def _per_layer(shape):
    n = len(shape)
    return pl.BlockSpec(shape, lambda b, l: (l,) + (0,) * (n - 1))


def _per_batch(shape):
    n = len(shape)
    return pl.BlockSpec(shape, lambda b, l: (b,) + (0,) * (n - 1))


def distilbert_class_forward(params, ids, mask):
    B, S = ids.shape
    # Embedding gather is plain-JAX glue; LayerNorm + encoder + classifier run
    # inside the single fused Pallas kernel.
    x = (params["word_emb"][ids]
         + params["pos_emb"][jnp.arange(S)][None, :, :]).astype(jnp.float32)
    mask_add = (1.0 - mask.astype(jnp.float32)).reshape(B, 1, S) * -1e9

    out_pad = pl.pallas_call(
        fused_forward_kernel,
        out_shape=jax.ShapeDtypeStruct((B, S, CLSP), jnp.float32),
        grid=(B, LAYERS),
        in_specs=[
            _per_batch((1, S, D)),            # pre-LN embeddings
            _per_batch((1, 1, S)),            # additive key-padding mask
            _rep((2, D)),                     # embedding LN gamma / beta
            _per_layer((1, H, D, 3 * DH)),    # fused QKV weight, head-split, bf16
            _per_layer((1, H, 1, 3 * DH)),    # fused QKV bias
            _per_layer((1, H, DH, D)),        # output projection, head-split, bf16
            _per_layer((1, D, F)),            # FFN W1, bf16
            _per_layer((1, 1, F)),            # FFN b1
            _per_layer((1, F, D)),            # FFN W2, bf16
            _per_layer((1, 8, D)),            # [bo, b2, ln1_g, ln1_b, ln2_g, ln2_b, 0, 0]
            _rep((D, CLSP)),                  # classifier weight (lane-padded), bf16
            _rep((1, CLSP)),                  # classifier bias  (lane-padded)
        ],
        out_specs=_per_batch((1, S, CLSP)),
        scratch_shapes=[pltpu.VMEM((S, D), jnp.float32)],
        compiler_params=pltpu.CompilerParams(
            dimension_semantics=("parallel", "arbitrary"),
            # raise for real DistilBERT shapes (v5e default is only 16 MiB)
            vmem_limit_bytes=32 * 1024 * 1024),
    )(x, mask_add, params["emb_ln"],
      params["wqkv"], params["b_qkv"], params["wo"],
      params["w1"], params["b1"], params["w2"], params["vecd"],
      params["cls_w"], params["cls_b"])

    # Linear(D,1) logits live in lane 0 of the lane-dense padded output.
    return out_pad[:, :, 0:1]


# ------------------------------------------------------------------- params --

def init_params(key):
    ks = iter(jax.random.split(key, 64))

    def nrm(shape, scale=0.02):
        return scale * jax.random.normal(next(ks), shape, dtype=jnp.float32)

    def head_cols(w):                    # [D, D] -> [H, D, DH] (output-feature split)
        return w.reshape(D, H, DH).transpose(1, 0, 2)

    wqkv, bqkv, wo, w1, b1, w2, vecd = [], [], [], [], [], [], []
    for _ in range(LAYERS):
        wq, wk, wv = nrm((D, D)), nrm((D, D)), nrm((D, D))
        wo_l = nrm((D, D))
        wqkv.append(jnp.concatenate(
            [head_cols(wq), head_cols(wk), head_cols(wv)], axis=-1))  # [H, D, 3*DH]
        bqkv.append(jnp.zeros((H, 1, 3 * DH), jnp.float32))
        wo.append(wo_l.reshape(H, DH, D))                             # [H, DH, D]
        w1.append(nrm((D, F)))
        b1.append(jnp.zeros((1, F), jnp.float32))
        w2.append(nrm((F, D)))
        v = jnp.zeros((8, D), jnp.float32)
        v = v.at[2].set(1.0).at[4].set(1.0)     # ln1_gamma, ln2_gamma = 1
        vecd.append(v)

    cls_w = nrm((D, 1))
    cls_w_pad = jnp.zeros((D, CLSP), jnp.float32).at[:, 0:1].set(cls_w)

    return {
        "word_emb": nrm((VOCAB, D)),
        "pos_emb": nrm((MAX_POS, D)),
        "emb_ln": jnp.stack([jnp.ones((D,), jnp.float32),
                             jnp.zeros((D,), jnp.float32)]),          # [2, D]
        "wqkv": jnp.stack(wqkv).astype(jnp.bfloat16),                 # [L, H, D, 3*DH]
        "b_qkv": jnp.stack(bqkv),                                     # [L, H, 1, 3*DH]
        "wo": jnp.stack(wo).astype(jnp.bfloat16),                     # [L, H, DH, D]
        "w1": jnp.stack(w1).astype(jnp.bfloat16),                     # [L, D, F]
        "b1": jnp.stack(b1),                                          # [L, 1, F]
        "w2": jnp.stack(w2).astype(jnp.bfloat16),                     # [L, F, D]
        "vecd": jnp.stack(vecd),                                      # [L, 8, D]
        "cls_w": cls_w_pad.astype(jnp.bfloat16),                      # [D, CLSP]
        "cls_b": jnp.zeros((1, CLSP), jnp.float32),                   # [1, CLSP]
    }


# --------------------------------------------------------------------- main --

if __name__ == "__main__":
    B, S = 2, 8
    root = jax.random.PRNGKey(0)
    k_param, k_ids = jax.random.split(root)

    params = init_params(k_param)
    ids = jax.random.randint(k_ids, (B, S), 0, VOCAB, dtype=jnp.int32)
    # second sequence has 3 padded positions to exercise the attention mask
    lengths = jnp.array([[S], [S - 3]], dtype=jnp.int32)
    mask = (jnp.arange(S)[None, :] < lengths).astype(jnp.int32)

    out = distilbert_class_forward(params, ids, mask)
    out = jax.block_until_ready(out)
    assert out.shape == (B, S, 1) and out.dtype == jnp.float32
    assert bool(jnp.all(jnp.isfinite(out)))
    print("KERNEL_OK")
</pallas_src>

<mosaic_0001>
module attributes {stable_mosaic.version = 11 : i64} {
  func.func @fused_forward_kernel(%arg0: i32, %arg1: i32, %arg2: memref<1x8x128xf32, #tpu.memory_space<vmem>>, %arg3: memref<1x1x8xf32, #tpu.memory_space<vmem>>, %arg4: memref<2x128xf32, #tpu.memory_space<vmem>>, %arg5: memref<1x4x128x96xbf16, #tpu.memory_space<vmem>>, %arg6: memref<1x4x1x96xf32, #tpu.memory_space<vmem>>, %arg7: memref<1x4x32x128xbf16, #tpu.memory_space<vmem>>, %arg8: memref<1x128x256xbf16, #tpu.memory_space<vmem>>, %arg9: memref<1x1x256xf32, #tpu.memory_space<vmem>>, %arg10: memref<1x256x128xbf16, #tpu.memory_space<vmem>>, %arg11: memref<1x8x128xf32, #tpu.memory_space<vmem>>, %arg12: memref<128x128xbf16, #tpu.memory_space<vmem>>, %arg13: memref<1x128xf32, #tpu.memory_space<vmem>>, %arg14: memref<1x8x128xf32, #tpu.memory_space<vmem>>, %arg15: memref<8x128xf32, #tpu.memory_space<vmem>>) attributes {dimension_semantics = [#tpu.dimension_semantics<parallel>, #tpu.dimension_semantics<arbitrary>], iteration_bounds = array<i64: 2, 2>, scalar_prefetch = 0 : i64, scratch_operands = 1 : i64, tpu.core_type = #tpu.core_type<tc>, window_params = [{transform_indices = @transform_0, window_bounds = array<i64: 1, 8, 128>}, {transform_indices = @transform_1, window_bounds = array<i64: 1, 1, 8>}, {pipeline_mode = #tpu.pipeline_mode<synchronous>, transform_indices = @transform_2, window_bounds = array<i64: 2, 128>}, {transform_indices = @transform_3, window_bounds = array<i64: 1, 4, 128, 96>}, {transform_indices = @transform_4, window_bounds = array<i64: 1, 4, 1, 96>}, {transform_indices = @transform_5, window_bounds = array<i64: 1, 4, 32, 128>}, {transform_indices = @transform_6, window_bounds = array<i64: 1, 128, 256>}, {transform_indices = @transform_7, window_bounds = array<i64: 1, 1, 256>}, {transform_indices = @transform_8, window_bounds = array<i64: 1, 256, 128>}, {transform_indices = @transform_9, window_bounds = array<i64: 1, 8, 128>}, {pipeline_mode = #tpu.pipeline_mode<synchronous>, transform_indices = @transform_10, window_bounds = array<i64: 128, 128>}, {pipeline_mode = #tpu.pipeline_mode<synchronous>, transform_indices = @transform_11, window_bounds = array<i64: 1, 128>}, {transform_indices = @transform_12, window_bounds = array<i64: 1, 8, 128>}]} {
    %c0_i32 = arith.constant 0 : i32
    %0 = arith.cmpi eq, %arg1, %c0_i32 : i32
    %1 = arith.extui %0 : i1 to i32
    %c0_i32_0 = arith.constant 0 : i32
    %2 = arith.cmpi ne, %1, %c0_i32_0 : i32
    scf.if %2 {
      %c0_66 = arith.constant 0 : index
      %c0_67 = arith.constant 0 : index
      %c0_68 = arith.constant 0 : index
      %153 = vector.load %arg2[%c0_66, %c0_67, %c0_68] : memref<1x8x128xf32, #tpu.memory_space<vmem>>, vector<1x8x128xf32>
      %154 = vector.shape_cast %153 : vector<1x8x128xf32> to vector<8x128xf32>
      %c0_69 = arith.constant 0 : index
      %c0_70 = arith.constant 0 : index
      %155 = vector.load %arg4[%c0_69, %c0_70] : memref<2x128xf32, #tpu.memory_space<vmem>>, vector<1x128xf32>
      %c1 = arith.constant 1 : index
      %c0_71 = arith.constant 0 : index
      %156 = vector.load %arg4[%c1, %c0_71] : memref<2x128xf32, #tpu.memory_space<vmem>>, vector<1x128xf32>
      %cst_72 = arith.constant dense<0.000000e+00> : vector<8xf32>
      %157 = vector.multi_reduction <add>, %154, %cst_72 [1] : vector<8x128xf32> to vector<8xf32>
      %158 = vector.shape_cast %157 : vector<8xf32> to vector<8x1xf32>
      %cst_73 = arith.constant 1.280000e+02 : f32
      %159 = vector.broadcast %cst_73 : f32 to vector<8x1xf32>
      %160 = arith.divf %158, %159 : vector<8x1xf32>
      %161 = vector.broadcast %160 : vector<8x1xf32> to vector<8x128xf32>
      %162 = arith.subf %154, %161 : vector<8x128xf32>
      %163 = arith.mulf %162, %162 : vector<8x128xf32>
      %cst_74 = arith.constant dense<0.000000e+00> : vector<8xf32>
      %164 = vector.multi_reduction <add>, %163, %cst_74 [1] : vector<8x128xf32> to vector<8xf32>
      %165 = vector.shape_cast %164 : vector<8xf32> to vector<8x1xf32>
      %cst_75 = arith.constant 1.280000e+02 : f32
      %166 = vector.broadcast %cst_75 : f32 to vector<8x1xf32>
      %167 = arith.divf %165, %166 : vector<8x1xf32>
      %cst_76 = arith.constant 9.99999996E-13 : f32
      %168 = vector.broadcast %cst_76 : f32 to vector<8x1xf32>
      %169 = arith.addf %167, %168 : vector<8x1xf32>
      %170 = math.rsqrt %169 : vector<8x1xf32>
      %171 = vector.broadcast %170 : vector<8x1xf32> to vector<8x128xf32>
      %172 = arith.mulf %162, %171 : vector<8x128xf32>
      %173 = vector.broadcast %155 : vector<1x128xf32> to vector<8x128xf32>
      %174 = arith.mulf %172, %173 : vector<8x128xf32>
      %175 = vector.broadcast %156 : vector<1x128xf32> to vector<8x128xf32>
      %176 = arith.addf %174, %175 : vector<8x128xf32>
      %c0_77 = arith.constant 0 : index
      %c0_78 = arith.constant 0 : index
      %177 = vector.load %arg15[%c0_77, %c0_78] : memref<8x128xf32, #tpu.memory_space<vmem>>, vector<8x128xf32>
      tpu.vector_store %arg15[%c0_77, %c0_78], %176 {strides = array<i32>} : memref<8x128xf32, #tpu.memory_space<vmem>>, vector<8x128xf32>,
    } else {
    }
    %c0 = arith.constant 0 : index
    %c0_1 = arith.constant 0 : index
    %3 = vector.load %arg15[%c0, %c0_1] : memref<8x128xf32, #tpu.memory_space<vmem>>, vector<8x128xf32>
    %c0_2 = arith.constant 0 : index
    %c0_3 = arith.constant 0 : index
    %c0_4 = arith.constant 0 : index
    %4 = vector.load %arg11[%c0_2, %c0_3, %c0_4] : memref<1x8x128xf32, #tpu.memory_space<vmem>>, vector<1x8x128xf32>
    %5 = vector.shape_cast %4 : vector<1x8x128xf32> to vector<8x128xf32>
    %6 = vector.extract_strided_slice %5 {offsets = [0, 0], sizes = [1, 128], strides = [1, 1]} : vector<8x128xf32> to vector<1x128xf32>
    %7 = vector.extract_strided_slice %5 {offsets = [1, 0], sizes = [1, 128], strides = [1, 1]} : vector<8x128xf32> to vector<1x128xf32>
    %8 = vector.extract_strided_slice %5 {offsets = [2, 0], sizes = [1, 128], strides = [1, 1]} : vector<8x128xf32> to vector<1x128xf32>
    %9 = vector.extract_strided_slice %5 {offsets = [3, 0], sizes = [1, 128], strides = [1, 1]} : vector<8x128xf32> to vector<1x128xf32>
    %10 = vector.extract_strided_slice %5 {offsets = [4, 0], sizes = [1, 128], strides = [1, 1]} : vector<8x128xf32> to vector<1x128xf32>
    %11 = vector.extract_strided_slice %5 {offsets = [5, 0], sizes = [1, 128], strides = [1, 1]} : vector<8x128xf32> to vector<1x128xf32>
    %12 = arith.truncf %3 : vector<8x128xf32> to vector<8x128xbf16>
    %13 = vector.shape_cast %12 : vector<8x128xbf16> to vector<1x8x128xbf16>
    %14 = vector.broadcast %13 : vector<1x8x128xbf16> to vector<4x8x128xbf16>
    %c0_5 = arith.constant 0 : index
    %c0_6 = arith.constant 0 : index
    %c0_7 = arith.constant 0 : index
    %c0_8 = arith.constant 0 : index
    %15 = vector.load %arg5[%c0_5, %c0_6, %c0_7, %c0_8] : memref<1x4x128x96xbf16, #tpu.memory_space<vmem>>, vector<1x4x128x96xbf16>
    %16 = vector.shape_cast %15 : vector<1x4x128x96xbf16> to vector<4x128x96xbf16>
    "tpu.trace_start"() <{level = 10 : i32, message = "hsd,hde->hse"}> : () -> ()
    %cst = arith.constant dense<0.000000e+00> : vector<4x8x96xf32>
    %17 = tpu.matmul %14, %16, %cst {dimension_numbers = #tpu.dot_dimension_numbers<[2], [1], [1], [2], [0, 0, 0, 1, 1, 2], [0], [0]>} : vector<4x8x128xbf16>, vector<4x128x96xbf16>, vector<4x8x96xf32> -> vector<4x8x96xf32>
    "tpu.trace_stop"() : () -> ()
    %c0_9 = arith.constant 0 : index
    %c0_10 = arith.constant 0 : index
    %c0_11 = arith.constant 0 : index
    %c0_12 = arith.constant 0 : index
    %18 = vector.load %arg6[%c0_9, %c0_10, %c0_11, %c0_12] : memref<1x4x1x96xf32, #tpu.memory_space<vmem>>, vector<1x4x1x96xf32>
    %19 = vector.shape_cast %18 : vector<1x4x1x96xf32> to vector<4x1x96xf32>
    %20 = vector.broadcast %19 : vector<4x1x96xf32> to vector<4x8x96xf32>
    %21 = arith.addf %17, %20 : vector<4x8x96xf32>
    %22 = vector.extract_strided_slice %21 {offsets = [0, 0, 0], sizes = [4, 8, 32], strides = [1, 1, 1]} : vector<4x8x96xf32> to vector<4x8x32xf32>
    %23 = arith.truncf %22 : vector<4x8x32xf32> to vector<4x8x32xbf16>
    %24 = vector.extract_strided_slice %21 {offsets = [0, 0, 32], sizes = [4, 8, 32], strides = [1, 1, 1]} : vector<4x8x96xf32> to vector<4x8x32xf32>
    %25 = arith.truncf %24 : vector<4x8x32xf32> to vector<4x8x32xbf16>
    %26 = vector.extract_strided_slice %21 {offsets = [0, 0, 64], sizes = [4, 8, 32], strides = [1, 1, 1]} : vector<4x8x96xf32> to vector<4x8x32xf32>
    %27 = arith.truncf %26 : vector<4x8x32xf32> to vector<4x8x32xbf16>
    "tpu.trace_start"() <{level = 10 : i32, message = "hqd,hkd->hqk"}> : () -> ()
    %cst_13 = arith.constant dense<0.000000e+00> : vector<4x8x8xf32>
    %28 = tpu.matmul %23, %25, %cst_13 {dimension_numbers = #tpu.dot_dimension_numbers<[2], [2], [1], [1], [0, 0, 0, 1, 1, 1], [0], [0]>} : vector<4x8x32xbf16>, vector<4x8x32xbf16>, vector<4x8x8xf32> -> vector<4x8x8xf32>
    "tpu.trace_stop"() : () -> ()
    %cst_14 = arith.constant 0.176776692 : f32
    %29 = vector.broadcast %cst_14 : f32 to vector<4x8x8xf32>
    %30 = arith.mulf %28, %29 : vector<4x8x8xf32>
    %c0_15 = arith.constant 0 : index
    %c0_16 = arith.constant 0 : index
    %c0_17 = arith.constant 0 : index
    %31 = vector.load %arg3[%c0_15, %c0_16, %c0_17] : memref<1x1x8xf32, #tpu.memory_space<vmem>>, vector<1x1x8xf32>
    %32 = vector.broadcast %31 : vector<1x1x8xf32> to vector<4x8x8xf32>
    %33 = arith.addf %30, %32 : vector<4x8x8xf32>
    %cst_18 = arith.constant dense<0xFF800000> : vector<4x8xf32>
    %34 = vector.multi_reduction <maximumf>, %33, %cst_18 [2] : vector<4x8x8xf32> to vector<4x8xf32>
    %35 = vector.shape_cast %34 : vector<4x8xf32> to vector<4x8x1xf32>
    %36 = vector.broadcast %35 : vector<4x8x1xf32> to vector<4x8x8xf32>
    %37 = arith.subf %33, %36 : vector<4x8x8xf32>
    %38 = math.exp %37 : vector<4x8x8xf32>
    %cst_19 = arith.constant dense<0.000000e+00> : vector<4x8xf32>
    %39 = vector.multi_reduction <add>, %38, %cst_19 [2] : vector<4x8x8xf32> to vector<4x8xf32>
    %40 = vector.shape_cast %39 : vector<4x8xf32> to vector<4x8x1xf32>
    %41 = tpu.reciprocal %40 {approx = true} : vector<4x8x1xf32> -> vector<4x8x1xf32>
    %42 = vector.broadcast %41 : vector<4x8x1xf32> to vector<4x8x8xf32>
    %43 = arith.mulf %38, %42 : vector<4x8x8xf32>
    %44 = arith.truncf %43 : vector<4x8x8xf32> to vector<4x8x8xbf16>
    "tpu.trace_start"() <{level = 10 : i32, message = "hqk,hkd->hqd"}> : () -> ()
    %cst_20 = arith.constant dense<0.000000e+00> : vector<4x8x32xf32>
    %45 = tpu.matmul %44, %27, %cst_20 {dimension_numbers = #tpu.dot_dimension_numbers<[2], [1], [1], [2], [0, 0, 0, 1, 1, 2], [0], [0]>} : vector<4x8x8xbf16>, vector<4x8x32xbf16>, vector<4x8x32xf32> -> vector<4x8x32xf32>
    "tpu.trace_stop"() : () -> ()
    %46 = arith.truncf %45 : vector<4x8x32xf32> to vector<4x8x32xbf16>
    %c0_21 = arith.constant 0 : index
    %c0_22 = arith.constant 0 : index
    %c0_23 = arith.constant 0 : index
    %c0_24 = arith.constant 0 : index
    %47 = vector.load %arg7[%c0_21, %c0_22, %c0_23, %c0_24] : memref<1x4x32x128xbf16, #tpu.memory_space<vmem>>, vector<1x4x32x128xbf16>
    %48 = vector.shape_cast %47 : vector<1x4x32x128xbf16> to vector<4x32x128xbf16>
    "tpu.trace_start"() <{level = 10 : i32, message = "hqd,hde->hqe"}> : () -> ()
    %cst_25 = arith.constant dense<0.000000e+00> : vector<4x8x128xf32>
    %49 = tpu.matmul %46, %48, %cst_25 {dimension_numbers = #tpu.dot_dimension_numbers<[2], [1], [1], [2], [0, 0, 0, 1, 1, 2], [0], [0]>} : vector<4x8x32xbf16>, vector<4x32x128xbf16>, vector<4x8x128xf32> -> vector<4x8x128xf32>
    "tpu.trace_stop"() : () -> ()
    %cst_26 = arith.constant dense<0.000000e+00> : vector<8x128xf32>
    %50 = vector.multi_reduction <add>, %49, %cst_26 [0] : vector<4x8x128xf32> to vector<8x128xf32>
    %51 = vector.broadcast %6 : vector<1x128xf32> to vector<8x128xf32>
    %52 = arith.addf %50, %51 : vector<8x128xf32>
    %53 = arith.addf %3, %52 : vector<8x128xf32>
    %cst_27 = arith.constant dense<0.000000e+00> : vector<8xf32>
    %54 = vector.multi_reduction <add>, %53, %cst_27 [1] : vector<8x128xf32> to vector<8xf32>
    %55 = vector.shape_cast %54 : vector<8xf32> to vector<8x1xf32>
    %cst_28 = arith.constant 1.280000e+02 : f32
    %56 = vector.broadcast %cst_28 : f32 to vector<8x1xf32>
    %57 = arith.divf %55, %56 : vector<8x1xf32>
    %58 = vector.broadcast %57 : vector<8x1xf32> to vector<8x128xf32>
    %59 = arith.subf %53, %58 : vector<8x128xf32>
    %60 = arith.mulf %59, %59 : vector<8x128xf32>
    %cst_29 = arith.constant dense<0.000000e+00> : vector<8xf32>
    %61 = vector.multi_reduction <add>, %60, %cst_29 [1] : vector<8x128xf32> to vector<8xf32>
    %62 = vector.shape_cast %61 : vector<8xf32> to vector<8x1xf32>
    %cst_30 = arith.constant 1.280000e+02 : f32
    %63 = vector.broadcast %cst_30 : f32 to vector<8x1xf32>
    %64 = arith.divf %62, %63 : vector<8x1xf32>
    %cst_31 = arith.constant 9.99999996E-13 : f32
    %65 = vector.broadcast %cst_31 : f32 to vector<8x1xf32>
    %66 = arith.addf %64, %65 : vector<8x1xf32>
    %67 = math.rsqrt %66 : vector<8x1xf32>
    %68 = vector.broadcast %67 : vector<8x1xf32> to vector<8x128xf32>
    %69 = arith.mulf %59, %68 : vector<8x128xf32>
    %70 = vector.broadcast %8 : vector<1x128xf32> to vector<8x128xf32>
    %71 = arith.mulf %69, %70 : vector<8x128xf32>
    %72 = vector.broadcast %9 : vector<1x128xf32> to vector<8x128xf32>
    %73 = arith.addf %71, %72 : vector<8x128xf32>
    %74 = arith.truncf %73 : vector<8x128xf32> to vector<8x128xbf16>
    %c0_32 = arith.constant 0 : index
    %c0_33 = arith.constant 0 : index
    %c0_34 = arith.constant 0 : index
    %75 = vector.load %arg8[%c0_32, %c0_33, %c0_34] : memref<1x128x256xbf16, #tpu.memory_space<vmem>>, vector<1x128x256xbf16>
    %76 = vector.shape_cast %75 : vector<1x128x256xbf16> to vector<128x256xbf16>
    %cst_35 = arith.constant dense<0.000000e+00> : vector<8x256xf32>
    %77 = tpu.matmul %74, %76, %cst_35 {dimension_numbers = #tpu.dot_dimension_numbers<[1], [0], [0], [1], [0, 0, 1, 1], [], []>} : vector<8x128xbf16>, vector<128x256xbf16>, vector<8x256xf32> -> vector<8x256xf32>
    %c0_36 = arith.constant 0 : index
    %c0_37 = arith.constant 0 : index
    %c0_38 = arith.constant 0 : index
    %78 = vector.load %arg9[%c0_36, %c0_37, %c0_38] : memref<1x1x256xf32, #tpu.memory_space<vmem>>, vector<1x1x256xf32>
    %79 = vector.shape_cast %78 : vector<1x1x256xf32> to vector<1x256xf32>
    %80 = vector.broadcast %79 : vector<1x256xf32> to vector<8x256xf32>
    %81 = arith.addf %77, %80 : vector<8x256xf32>
    %cst_39 = arith.constant 5.000000e-01 : f32
    %82 = vector.broadcast %cst_39 : f32 to vector<8x256xf32>
    %83 = arith.mulf %82, %81 : vector<8x256xf32>
    %cst_40 = arith.constant 0.707106769 : f32
    %84 = vector.broadcast %cst_40 : f32 to vector<8x256xf32>
    %85 = arith.mulf %81, %84 : vector<8x256xf32>
    %86 = math.absf %85 : vector<8x256xf32>
    %cst_41 = arith.constant 0.327591091 : f32
    %87 = vector.broadcast %cst_41 : f32 to vector<8x256xf32>
    %88 = arith.mulf %87, %86 : vector<8x256xf32>
    %cst_42 = arith.constant 1.000000e+00 : f32
    %89 = vector.broadcast %cst_42 : f32 to vector<8x256xf32>
    %90 = arith.addf %89, %88 : vector<8x256xf32>
    %cst_43 = arith.constant 1.000000e+00 : f32
    %91 = vector.broadcast %cst_43 : f32 to vector<8x256xf32>
    %92 = arith.divf %91, %90 : vector<8x256xf32>
    %cst_44 = arith.constant 1.06140542 : f32
    %93 = vector.broadcast %cst_44 : f32 to vector<8x256xf32>
    %94 = arith.mulf %92, %93 : vector<8x256xf32>
    %cst_45 = arith.constant -1.45315206 : f32
    %95 = vector.broadcast %cst_45 : f32 to vector<8x256xf32>
    %96 = arith.addf %95, %94 : vector<8x256xf32>
    %97 = arith.mulf %92, %96 : vector<8x256xf32>
    %cst_46 = arith.constant 1.42141378 : f32
    %98 = vector.broadcast %cst_46 : f32 to vector<8x256xf32>
    %99 = arith.addf %98, %97 : vector<8x256xf32>
    %100 = arith.mulf %92, %99 : vector<8x256xf32>
    %cst_47 = arith.constant -0.284496725 : f32
    %101 = vector.broadcast %cst_47 : f32 to vector<8x256xf32>
    %102 = arith.addf %101, %100 : vector<8x256xf32>
    %103 = arith.mulf %92, %102 : vector<8x256xf32>
    %cst_48 = arith.constant 0.254829586 : f32
    %104 = vector.broadcast %cst_48 : f32 to vector<8x256xf32>
    %105 = arith.addf %104, %103 : vector<8x256xf32>
    %106 = arith.mulf %92, %105 : vector<8x256xf32>
    %cst_49 = arith.constant 0.000000e+00 : f32
    %107 = vector.broadcast %cst_49 : f32 to vector<8x256xf32>
    %108 = arith.subf %107, %85 : vector<8x256xf32>
    %109 = arith.mulf %108, %85 : vector<8x256xf32>
    %110 = math.exp %109 : vector<8x256xf32>
    %111 = arith.mulf %106, %110 : vector<8x256xf32>
    %cst_50 = arith.constant 1.000000e+00 : f32
    %112 = vector.broadcast %cst_50 : f32 to vector<8x256xf32>
    %113 = arith.subf %112, %111 : vector<8x256xf32>
    %cst_51 = arith.constant 0.000000e+00 : f32
    %114 = vector.broadcast %cst_51 : f32 to vector<8x256xf32>
    %115 = arith.cmpf oge, %85, %114 : vector<8x256xf32>
    %cst_52 = arith.constant 0.000000e+00 : f32
    %116 = vector.broadcast %cst_52 : f32 to vector<8x256xf32>
    %117 = arith.subf %116, %113 : vector<8x256xf32>
    %118 = arith.select %115, %113, %117 : vector<8x256xi1>, vector<8x256xf32>
    %cst_53 = arith.constant 1.000000e+00 : f32
    %119 = vector.broadcast %cst_53 : f32 to vector<8x256xf32>
    %120 = arith.addf %119, %118 : vector<8x256xf32>
    %121 = arith.mulf %83, %120 : vector<8x256xf32>
    %122 = arith.truncf %121 : vector<8x256xf32> to vector<8x256xbf16>
    %c0_54 = arith.constant 0 : index
    %c0_55 = arith.constant 0 : index
    %c0_56 = arith.constant 0 : index
    %123 = vector.load %arg10[%c0_54, %c0_55, %c0_56] : memref<1x256x128xbf16, #tpu.memory_space<vmem>>, vector<1x256x128xbf16>
    %124 = vector.shape_cast %123 : vector<1x256x128xbf16> to vector<256x128xbf16>
    %cst_57 = arith.constant dense<0.000000e+00> : vector<8x128xf32>
    %125 = tpu.matmul %122, %124, %cst_57 {dimension_numbers = #tpu.dot_dimension_numbers<[1], [0], [0], [1], [0, 0, 1, 1], [], []>} : vector<8x256xbf16>, vector<256x128xbf16>, vector<8x128xf32> -> vector<8x128xf32>
    %126 = vector.broadcast %7 : vector<1x128xf32> to vector<8x128xf32>
    %127 = arith.addf %125, %126 : vector<8x128xf32>
    %128 = arith.addf %73, %127 : vector<8x128xf32>
    %cst_58 = arith.constant dense<0.000000e+00> : vector<8xf32>
    %129 = vector.multi_reduction <add>, %128, %cst_58 [1] : vector<8x128xf32> to vector<8xf32>
    %130 = vector.shape_cast %129 : vector<8xf32> to vector<8x1xf32>
    %cst_59 = arith.constant 1.280000e+02 : f32
    %131 = vector.broadcast %cst_59 : f32 to vector<8x1xf32>
    %132 = arith.divf %130, %131 : vector<8x1xf32>
    %133 = vector.broadcast %132 : vector<8x1xf32> to vector<8x128xf32>
    %134 = arith.subf %128, %133 : vector<8x128xf32>
    %135 = arith.mulf %134, %134 : vector<8x128xf32>
    %cst_60 = arith.constant dense<0.000000e+00> : vector<8xf32>
    %136 = vector.multi_reduction <add>, %135, %cst_60 [1] : vector<8x128xf32> to vector<8xf32>
    %137 = vector.shape_cast %136 : vector<8xf32> to vector<8x1xf32>
    %cst_61 = arith.constant 1.280000e+02 : f32
    %138 = vector.broadcast %cst_61 : f32 to vector<8x1xf32>
    %139 = arith.divf %137, %138 : vector<8x1xf32>
    %cst_62 = arith.constant 9.99999996E-13 : f32
    %140 = vector.broadcast %cst_62 : f32 to vector<8x1xf32>
    %141 = arith.addf %139, %140 : vector<8x1xf32>
    %142 = math.rsqrt %141 : vector<8x1xf32>
    %143 = vector.broadcast %142 : vector<8x1xf32> to vector<8x128xf32>
    %144 = arith.mulf %134, %143 : vector<8x128xf32>
    %145 = vector.broadcast %10 : vector<1x128xf32> to vector<8x128xf32>
    %146 = arith.mulf %144, %145 : vector<8x128xf32>
    %147 = vector.broadcast %11 : vector<1x128xf32> to vector<8x128xf32>
    %148 = arith.addf %146, %147 : vector<8x128xf32>
    %c0_63 = arith.constant 0 : index
    %c0_64 = arith.constant 0 : index
    %149 = vector.load %arg15[%c0_63, %c0_64] : memref<8x128xf32, #tpu.memory_space<vmem>>, vector<8x128xf32>
    tpu.vector_store %arg15[%c0_63, %c0_64], %148 {strides = array<i32>} : memref<8x128xf32, #tpu.memory_space<vmem>>, vector<8x128xf32>,
    %c1_i32 = arith.constant 1 : i32
    %150 = arith.cmpi eq, %arg1, %c1_i32 : i32
    %151 = arith.extui %150 : i1 to i32
    %c0_i32_65 = arith.constant 0 : i32
    %152 = arith.cmpi ne, %151, %c0_i32_65 : i32
    scf.if %152 {
      %153 = arith.truncf %148 : vector<8x128xf32> to vector<8x128xbf16>
      %c0_66 = arith.constant 0 : index
      %c0_67 = arith.constant 0 : index
      %154 = vector.load %arg12[%c0_66, %c0_67] : memref<128x128xbf16, #tpu.memory_space<vmem>>, vector<128x128xbf16>
      %cst_68 = arith.constant dense<0.000000e+00> : vector<8x128xf32>
      %155 = tpu.matmul %153, %154, %cst_68 {dimension_numbers = #tpu.dot_dimension_numbers<[1], [0], [0], [1], [0, 0, 1, 1], [], []>} : vector<8x128xbf16>, vector<128x128xbf16>, vector<8x128xf32> -> vector<8x128xf32>
      %c0_69 = arith.constant 0 : index
      %c0_70 = arith.constant 0 : index
      %156 = vector.load %arg13[%c0_69, %c0_70] : memref<1x128xf32, #tpu.memory_space<vmem>>, vector<1x128xf32>
      %157 = vector.broadcast %156 : vector<1x128xf32> to vector<8x128xf32>
      %158 = arith.addf %155, %157 : vector<8x128xf32>
      %c0_71 = arith.constant 0 : index
      %c0_72 = arith.constant 0 : index
      %c0_73 = arith.constant 0 : index
      %159 = vector.load %arg14[%c0_71, %c0_72, %c0_73] : memref<1x8x128xf32, #tpu.memory_space<vmem>>, vector<1x8x128xf32>
      %160 = vector.shape_cast %159 : vector<1x8x128xf32> to vector<8x128xf32>
      %161 = vector.shape_cast %158 : vector<8x128xf32> to vector<1x8x128xf32>
      tpu.vector_store %arg14[%c0_71, %c0_72, %c0_73], %161 {strides = array<i32>} : memref<1x8x128xf32, #tpu.memory_space<vmem>>, vector<1x8x128xf32>,
    } else {
    }
    return
  }
  func.func @transform_0(%arg0: i32, %arg1: i32) -> (i32, i32, i32) {
    %c0_i32 = arith.constant 0 : i32
    %c0_i32_0 = arith.constant 0 : i32
    %c0_i32_1 = arith.constant 0 : i32
    return %arg0, %c0_i32, %c0_i32_0 : i32, i32, i32
  }
  func.func @transform_1(%arg0: i32, %arg1: i32) -> (i32, i32, i32) {
    %c0_i32 = arith.constant 0 : i32
    %c0_i32_0 = arith.constant 0 : i32
    %c0_i32_1 = arith.constant 0 : i32
    return %arg0, %c0_i32, %c0_i32_0 : i32, i32, i32
  }
  func.func @transform_2(%arg0: i32, %arg1: i32) -> (i32, i32) {
    %c0_i32 = arith.constant 0 : i32
    %c0_i32_0 = arith.constant 0 : i32
    %c0_i32_1 = arith.constant 0 : i32
    return %c0_i32, %c0_i32_0 : i32, i32
  }
  func.func @transform_3(%arg0: i32, %arg1: i32) -> (i32, i32, i32, i32) {
    %c0_i32 = arith.constant 0 : i32
    %c0_i32_0 = arith.constant 0 : i32
    %c0_i32_1 = arith.constant 0 : i32
    %c0_i32_2 = arith.constant 0 : i32
    return %arg1, %c0_i32, %c0_i32_0, %c0_i32_1 : i32, i32, i32, i32
  }
  func.func @transform_4(%arg0: i32, %arg1: i32) -> (i32, i32, i32, i32) {
    %c0_i32 = arith.constant 0 : i32
    %c0_i32_0 = arith.constant 0 : i32
    %c0_i32_1 = arith.constant 0 : i32
    %c0_i32_2 = arith.constant 0 : i32
    return %arg1, %c0_i32, %c0_i32_0, %c0_i32_1 : i32, i32, i32, i32
  }
  func.func @transform_5(%arg0: i32, %arg1: i32) -> (i32, i32, i32, i32) {
    %c0_i32 = arith.constant 0 : i32
    %c0_i32_0 = arith.constant 0 : i32
    %c0_i32_1 = arith.constant 0 : i32
    %c0_i32_2 = arith.constant 0 : i32
    return %arg1, %c0_i32, %c0_i32_0, %c0_i32_1 : i32, i32, i32, i32
  }
  func.func @transform_6(%arg0: i32, %arg1: i32) -> (i32, i32, i32) {
    %c0_i32 = arith.constant 0 : i32
    %c0_i32_0 = arith.constant 0 : i32
    %c0_i32_1 = arith.constant 0 : i32
    return %arg1, %c0_i32, %c0_i32_0 : i32, i32, i32
  }
  func.func @transform_7(%arg0: i32, %arg1: i32) -> (i32, i32, i32) {
    %c0_i32 = arith.constant 0 : i32
    %c0_i32_0 = arith.constant 0 : i32
    %c0_i32_1 = arith.constant 0 : i32
    return %arg1, %c0_i32, %c0_i32_0 : i32, i32, i32
  }
  func.func @transform_8(%arg0: i32, %arg1: i32) -> (i32, i32, i32) {
    %c0_i32 = arith.constant 0 : i32
    %c0_i32_0 = arith.constant 0 : i32
    %c0_i32_1 = arith.constant 0 : i32
    return %arg1, %c0_i32, %c0_i32_0 : i32, i32, i32
  }
  func.func @transform_9(%arg0: i32, %arg1: i32) -> (i32, i32, i32) {
    %c0_i32 = arith.constant 0 : i32
    %c0_i32_0 = arith.constant 0 : i32
    %c0_i32_1 = arith.constant 0 : i32
    return %arg1, %c0_i32, %c0_i32_0 : i32, i32, i32
  }
  func.func @transform_10(%arg0: i32, %arg1: i32) -> (i32, i32) {
    %c0_i32 = arith.constant 0 : i32
    %c0_i32_0 = arith.constant 0 : i32
    %c0_i32_1 = arith.constant 0 : i32
    return %c0_i32, %c0_i32_0 : i32, i32
  }
  func.func @transform_11(%arg0: i32, %arg1: i32) -> (i32, i32) {
    %c0_i32 = arith.constant 0 : i32
    %c0_i32_0 = arith.constant 0 : i32
    %c0_i32_1 = arith.constant 0 : i32
    return %c0_i32, %c0_i32_0 : i32, i32
  }
  func.func @transform_12(%arg0: i32, %arg1: i32) -> (i32, i32, i32) {
    %c0_i32 = arith.constant 0 : i32
    %c0_i32_0 = arith.constant 0 : i32
    %c0_i32_1 = arith.constant 0 : i32
    return %arg0, %c0_i32, %c0_i32_0 : i32, i32, i32
  }
}

</mosaic_0001>

<llo_original>
// kernel: tpu_custom_call.1
$region0: #{tpu_custom_call.1}
  #allocation0 [shape = 'u32[]', space=smem, size = 0x4, offset = 0x4, fixed_abs, tag = 'smem constant byte address 0x4 - core index']
  #allocation1 [shape = 'u32[144,128]{1,0:T(1,128)}', space=vmem, size = 0x12000, scoped, tag = 'internal scratch']
  #allocation2 [shape = 'f32[8,128]{1,0:T(8,128)}', space=vmem, size = 0x1000, scoped, tag = 'scratch operand']
  %s0 = inlined_call_operand.vmem [shape: f32[2,8,128], index: 0, kind: input, shape index: {}]
  %s1 = inlined_call_operand.vmem [shape: f32[2,1,8], index: 1, kind: input, shape index: {}]
  %s2 = inlined_call_operand.vmem [shape: f32[2,128], index: 2, kind: input, shape index: {}]
  %s3 = inlined_call_operand.vmem [shape: bf16[2,4,128,96], index: 3, kind: input, shape index: {}]
  %s4 = inlined_call_operand.vmem [shape: f32[2,4,1,96], index: 4, kind: input, shape index: {}]
  %s5 = inlined_call_operand.vmem [shape: bf16[2,4,32,128], index: 5, kind: input, shape index: {}]
  %s6 = inlined_call_operand.vmem [shape: bf16[2,128,256], index: 6, kind: input, shape index: {}]
  %s7 = inlined_call_operand.vmem [shape: f32[2,1,256], index: 7, kind: input, shape index: {}]
  %s8 = inlined_call_operand.vmem [shape: bf16[2,256,128], index: 8, kind: input, shape index: {}]
  %s9 = inlined_call_operand.vmem [shape: f32[2,8,128], index: 9, kind: input, shape index: {}]
  %s10 = inlined_call_operand.vmem [shape: bf16[128,128], index: 10, kind: input, shape index: {}]
  %s11 = inlined_call_operand.vmem [shape: f32[1,128], index: 11, kind: input, shape index: {}]
  %s12 = inlined_call_operand.hbm [shape: f32[2,8,128], index: 12, kind: output, shape index: {}]
  %s13 = sld [smem:[#allocation0]]
  $region89: #{tpu_custom_call.1} parent=0
    _
  %s15 = ssub.s32 1, %s13
  %s16 = scalar_select 0, %s15, %s13
  $region1: #{tpu_custom_call.1} parent=0
    #allocation3 [shape = 'u8[8192]{0}', space=vmem, size = 0x2000, scoped, tag = 'output window, operand 0']
    #allocation4 [shape = 's32[2]{0}', space=sflag, size = 0x8, scoped, tag = 'scoped memory for tpu_custom_call.1']
    %17 = vsyncpa [#allocation4], 0
    %s18 = scalar_lea.sflag [#allocation4], 1
    %19 = vsyncpa %s18, 0
    loop: start=0, step=1, limit=6
    $region2: #{tpu_custom_call.1} parent=1 // loop_pre_header
      _
    $region3: #{tpu_custom_call.1} parent=1 // loop_header
      %s21 = sphi 0, %s25
      %p22 = scmp.ge.s32.totalorder %s21, 6
      %s28 = sphi 0, %s40
      %s29 = sphi 0, %s36
      %s30 = sphi 0, %s28
      %s31 = sphi 0, %s29
      %s32 = sphi 0, %s30
      %s33 = sphi 0, %s31
      %s43 = sphi 0, %s45
      %s46 = sphi 0, %s43
      %s47 = sphi 0, %s46
      %s63 = sphi 0, %s47
      %s69 = sphi 0, %s71
      %s72 = sphi 0, %s69
      %s73 = sphi 0, %s72
      %s89 = sphi 0, %s73
      %s93 = sphi 0, %s93
      %s95 = sphi 0, %s93
      %s96 = sphi 0, %s95
      %s110 = sphi 0, %s96
      %s116 = sphi 0, %s118
      %s119 = sphi 0, %s116
      %s120 = sphi 0, %s119
      %s136 = sphi 0, %s120
      %s142 = sphi 0, %s144
      %s145 = sphi 0, %s142
      %s146 = sphi 0, %s145
      %s162 = sphi 0, %s146
      %s168 = sphi 0, %s170
      %s171 = sphi 0, %s168
      %s172 = sphi 0, %s171
      %s188 = sphi 0, %s172
      %s194 = sphi 0, %s196
      %s197 = sphi 0, %s194
      %s198 = sphi 0, %s197
      %s214 = sphi 0, %s198
      %s220 = sphi 0, %s222
      %s223 = sphi 0, %s220
      %s224 = sphi 0, %s223
      %s240 = sphi 0, %s224
      %s246 = sphi 0, %s248
      %s249 = sphi 0, %s246
      %s250 = sphi 0, %s249
      %s266 = sphi 0, %s250
      %s272 = sphi 0, %s274
      %s275 = sphi 0, %s272
      %s276 = sphi 0, %s275
      %s292 = sphi 0, %s276
      %s296 = sphi 0, %s296
      %s298 = sphi 0, %s296
      %s299 = sphi 0, %s298
      %s313 = sphi 0, %s299
      %s317 = sphi 0, %s317
      %s319 = sphi 0, %s317
      %s320 = sphi 0, %s319
      %s334 = sphi 0, %s320
      %s340 = sphi 0, %s342
      %s343 = sphi 0, %s340
      %s344 = sphi 0, %s343
      %s360 = sphi 0, %s344
    $region4: #{tpu_custom_call.1} parent=1 // loop_header_branch
      %24 = sbr.rel (%p22) target = $region8
    $region5: #{tpu_custom_call.1} parent=1 // loop_body
      %s26 = ssub.s32 %s21, 1
      %s27 = ssub.s32 %s21, 2
      %s34 = sadd.s32 1, %s29
      %p35 = scmp.ge.s32.totalorder %s34, 2
      %s36 = scalar_select %p35, 0, %s34
      %s37 = sadd.s32 1, %s28
      %s38 = scalar_select %p35, %s37, %s28
      %p39 = scmp.ge.s32.totalorder %s38, 2
      %s40 = scalar_select %p39, 0, %s38
      %s41 = ssub.s32 %s28, %s40
      %p42 = scmp.eq.s32.totalorder %s41, 0
      %s44 = sadd.s32 %s43, 1
      %s45 = scalar_select %p42, %s43, %s44
      %p48 = pneg %p42
      %p49 = scmp.eq.s32.totalorder %s21, 3
      %p50 = por %p48, %p49
      %p51 = scmp.ne.s32.totalorder %s43, %s46
      %p52 = scmp.eq.s32.totalorder %s21, 0
      %p53 = por %p51, %p52
      %p54 = scmp.ne.s32.totalorder %s43, %s46
      %p55 = scmp.eq.s32.totalorder %s26, 3
      %p56 = por %p54, %p55
      %p57 = scmp.ne.s32.totalorder %s46, %s47
      %p58 = scmp.eq.s32.totalorder %s26, 0
      %p59 = por %p57, %p58
      %p60 = scmp.ne.s32.totalorder %s46, %s47
      %p61 = scmp.eq.s32.totalorder %s27, 3
      %p62 = por %p60, %p61
      %p64 = scmp.ne.s32.totalorder %s47, %s63
      %p65 = scmp.eq.s32.totalorder %s27, 0
      %p66 = por %p64, %p65
      %s67 = ssub.s32 %s28, %s40
      %p68 = scmp.eq.s32.totalorder %s67, 0
      %s70 = sadd.s32 %s69, 1
      %s71 = scalar_select %p68, %s69, %s70
      %p74 = pneg %p68
      %p75 = scmp.eq.s32.totalorder %s21, 3
      %p76 = por %p74, %p75
      %p77 = scmp.ne.s32.totalorder %s69, %s72
      %p78 = scmp.eq.s32.totalorder %s21, 0
      %p79 = por %p77, %p78
      %p80 = scmp.ne.s32.totalorder %s69, %s72
      %p81 = scmp.eq.s32.totalorder %s26, 3
      %p82 = por %p80, %p81
      %p83 = scmp.ne.s32.totalorder %s72, %s73
      %p84 = scmp.eq.s32.totalorder %s26, 0
      %p85 = por %p83, %p84
      %p86 = scmp.ne.s32.totalorder %s72, %s73
      %p87 = scmp.eq.s32.totalorder %s27, 3
      %p88 = por %p86, %p87
      %p90 = scmp.ne.s32.totalorder %s73, %s89
      %p91 = scmp.eq.s32.totalorder %s27, 0
      %p92 = por %p90, %p91
      %s94 = sadd.s32 %s93, 1
      %p97 = scmp.eq.s32.totalorder %s21, 3
      %p98 = scmp.ne.s32.totalorder %s93, %s95
      %p99 = scmp.eq.s32.totalorder %s21, 0
      %p100 = por %p98, %p99
      %p101 = scmp.ne.s32.totalorder %s93, %s95
      %p102 = scmp.eq.s32.totalorder %s26, 3
      %p103 = por %p101, %p102
      %p104 = scmp.ne.s32.totalorder %s95, %s96
      %p105 = scmp.eq.s32.totalorder %s26, 0
      %p106 = por %p104, %p105
      %p107 = scmp.ne.s32.totalorder %s95, %s96
      %p108 = scmp.eq.s32.totalorder %s27, 3
      %p109 = por %p107, %p108
      %p111 = scmp.ne.s32.totalorder %s96, %s110
      %p112 = scmp.eq.s32.totalorder %s27, 0
      %p113 = por %p111, %p112
      %s114 = ssub.s32 %s29, %s36
      %p115 = scmp.eq.s32.totalorder %s114, 0
      %s117 = sadd.s32 %s116, 1
      %s118 = scalar_select %p115, %s116, %s117
      %p121 = pneg %p115
      %p122 = scmp.eq.s32.totalorder %s21, 3
      %p123 = por %p121, %p122
      %p124 = scmp.ne.s32.totalorder %s116, %s119
      %p125 = scmp.eq.s32.totalorder %s21, 0
      %p126 = por %p124, %p125
      %p127 = scmp.ne.s32.totalorder %s116, %s119
      %p128 = scmp.eq.s32.totalorder %s26, 3
      %p129 = por %p127, %p128
      %p130 = scmp.ne.s32.totalorder %s119, %s120
      %p131 = scmp.eq.s32.totalorder %s26, 0
      %p132 = por %p130, %p131
      %p133 = scmp.ne.s32.totalorder %s119, %s120
      %p134 = scmp.eq.s32.totalorder %s27, 3
      %p135 = por %p133, %p134
      %p137 = scmp.ne.s32.totalorder %s120, %s136
      %p138 = scmp.eq.s32.totalorder %s27, 0
      %p139 = por %p137, %p138
      %s140 = ssub.s32 %s29, %s36
      %p141 = scmp.eq.s32.totalorder %s140, 0
      %s143 = sadd.s32 %s142, 1
      %s144 = scalar_select %p141, %s142, %s143
      %p147 = pneg %p141
      %p148 = scmp.eq.s32.totalorder %s21, 3
      %p149 = por %p147, %p148
      %p150 = scmp.ne.s32.totalorder %s142, %s145
      %p151 = scmp.eq.s32.totalorder %s21, 0
      %p152 = por %p150, %p151
      %p153 = scmp.ne.s32.totalorder %s142, %s145
      %p154 = scmp.eq.s32.totalorder %s26, 3
      %p155 = por %p153, %p154
      %p156 = scmp.ne.s32.totalorder %s145, %s146
      %p157 = scmp.eq.s32.totalorder %s26, 0
      %p158 = por %p156, %p157
      %p159 = scmp.ne.s32.totalorder %s145, %s146
      %p160 = scmp.eq.s32.totalorder %s27, 3
      %p161 = por %p159, %p160
      %p163 = scmp.ne.s32.totalorder %s146, %s162
      %p164 = scmp.eq.s32.totalorder %s27, 0
      %p165 = por %p163, %p164
      %s166 = ssub.s32 %s29, %s36
      %p167 = scmp.eq.s32.totalorder %s166, 0
      %s169 = sadd.s32 %s168, 1
      %s170 = scalar_select %p167, %s168, %s169
      %p173 = pneg %p167
      %p174 = scmp.eq.s32.totalorder %s21, 3
      %p175 = por %p173, %p174
      %p176 = scmp.ne.s32.totalorder %s168, %s171
      %p177 = scmp.eq.s32.totalorder %s21, 0
      %p178 = por %p176, %p177
      %p179 = scmp.ne.s32.totalorder %s168, %s171
      %p180 = scmp.eq.s32.totalorder %s26, 3
      %p181 = por %p179, %p180
      %p182 = scmp.ne.s32.totalorder %s171, %s172
      %p183 = scmp.eq.s32.totalorder %s26, 0
      %p184 = por %p182, %p183
      %p185 = scmp.ne.s32.totalorder %s171, %s172
      %p186 = scmp.eq.s32.totalorder %s27, 3
      %p187 = por %p185, %p186
      %p189 = scmp.ne.s32.totalorder %s172, %s188
      %p190 = scmp.eq.s32.totalorder %s27, 0
      %p191 = por %p189, %p190
      %s192 = ssub.s32 %s29, %s36
      %p193 = scmp.eq.s32.totalorder %s192, 0
      %s195 = sadd.s32 %s194, 1
      %s196 = scalar_select %p193, %s194, %s195
      %p199 = pneg %p193
      %p200 = scmp.eq.s32.totalorder %s21, 3
      %p201 = por %p199, %p200
      %p202 = scmp.ne.s32.totalorder %s194, %s197
      %p203 = scmp.eq.s32.totalorder %s21, 0
      %p204 = por %p202, %p203
      %p205 = scmp.ne.s32.totalorder %s194, %s197
      %p206 = scmp.eq.s32.totalorder %s26, 3
      %p207 = por %p205, %p206
      %p208 = scmp.ne.s32.totalorder %s197, %s198
      %p209 = scmp.eq.s32.totalorder %s26, 0
      %p210 = por %p208, %p209
      %p211 = scmp.ne.s32.totalorder %s197, %s198
      %p212 = scmp.eq.s32.totalorder %s27, 3
      %p213 = por %p211, %p212
      %p215 = scmp.ne.s32.totalorder %s198, %s214
      %p216 = scmp.eq.s32.totalorder %s27, 0
      %p217 = por %p215, %p216
      %s218 = ssub.s32 %s29, %s36
      %p219 = scmp.eq.s32.totalorder %s218, 0
      %s221 = sadd.s32 %s220, 1
      %s222 = scalar_select %p219, %s220, %s221
      %p225 = pneg %p219
      %p226 = scmp.eq.s32.totalorder %s21, 3
      %p227 = por %p225, %p226
      %p228 = scmp.ne.s32.totalorder %s220, %s223
      %p229 = scmp.eq.s32.totalorder %s21, 0
      %p230 = por %p228, %p229
      %p231 = scmp.ne.s32.totalorder %s220, %s223
      %p232 = scmp.eq.s32.totalorder %s26, 3
      %p233 = por %p231, %p232
      %p234 = scmp.ne.s32.totalorder %s223, %s224
      %p235 = scmp.eq.s32.totalorder %s26, 0
      %p236 = por %p234, %p235
      %p237 = scmp.ne.s32.totalorder %s223, %s224
      %p238 = scmp.eq.s32.totalorder %s27, 3
      %p239 = por %p237, %p238
      %p241 = scmp.ne.s32.totalorder %s224, %s240
      %p242 = scmp.eq.s32.totalorder %s27, 0
      %p243 = por %p241, %p242
      %s244 = ssub.s32 %s29, %s36
      %p245 = scmp.eq.s32.totalorder %s244, 0
      %s247 = sadd.s32 %s246, 1
      %s248 = scalar_select %p245, %s246, %s247
      %p251 = pneg %p245
      %p252 = scmp.eq.s32.totalorder %s21, 3
      %p253 = por %p251, %p252
      %p254 = scmp.ne.s32.totalorder %s246, %s249
      %p255 = scmp.eq.s32.totalorder %s21, 0
      %p256 = por %p254, %p255
      %p257 = scmp.ne.s32.totalorder %s246, %s249
      %p258 = scmp.eq.s32.totalorder %s26, 3
      %p259 = por %p257, %p258
      %p260 = scmp.ne.s32.totalorder %s249, %s250
      %p261 = scmp.eq.s32.totalorder %s26, 0
      %p262 = por %p260, %p261
      %p263 = scmp.ne.s32.totalorder %s249, %s250
      %p264 = scmp.eq.s32.totalorder %s27, 3
      %p265 = por %p263, %p264
      %p267 = scmp.ne.s32.totalorder %s250, %s266
      %p268 = scmp.eq.s32.totalorder %s27, 0
      %p269 = por %p267, %p268
      %s270 = ssub.s32 %s29, %s36
      %p271 = scmp.eq.s32.totalorder %s270, 0
      %s273 = sadd.s32 %s272, 1
      %s274 = scalar_select %p271, %s272, %s273
      %p277 = pneg %p271
      %p278 = scmp.eq.s32.totalorder %s21, 3
      %p279 = por %p277, %p278
      %p280 = scmp.ne.s32.totalorder %s272, %s275
      %p281 = scmp.eq.s32.totalorder %s21, 0
      %p282 = por %p280, %p281
      %p283 = scmp.ne.s32.totalorder %s272, %s275
      %p284 = scmp.eq.s32.totalorder %s26, 3
      %p285 = por %p283, %p284
      %p286 = scmp.ne.s32.totalorder %s275, %s276
      %p287 = scmp.eq.s32.totalorder %s26, 0
      %p288 = por %p286, %p287
      %p289 = scmp.ne.s32.totalorder %s275, %s276
      %p290 = scmp.eq.s32.totalorder %s27, 3
      %p291 = por %p289, %p290
      %p293 = scmp.ne.s32.totalorder %s276, %s292
      %p294 = scmp.eq.s32.totalorder %s27, 0
      %p295 = por %p293, %p294
      %s297 = sadd.s32 %s296, 1
      %p300 = scmp.eq.s32.totalorder %s21, 3
      %p301 = scmp.ne.s32.totalorder %s296, %s298
      %p302 = scmp.eq.s32.totalorder %s21, 0
      %p303 = por %p301, %p302
      %p304 = scmp.ne.s32.totalorder %s296, %s298
      %p305 = scmp.eq.s32.totalorder %s26, 3
      %p306 = por %p304, %p305
      %p307 = scmp.ne.s32.totalorder %s298, %s299
      %p308 = scmp.eq.s32.totalorder %s26, 0
      %p309 = por %p307, %p308
      %p310 = scmp.ne.s32.totalorder %s298, %s299
      %p311 = scmp.eq.s32.totalorder %s27, 3
      %p312 = por %p310, %p311
      %p314 = scmp.ne.s32.totalorder %s299, %s313
      %p315 = scmp.eq.s32.totalorder %s27, 0
      %p316 = por %p314, %p315
      %s318 = sadd.s32 %s317, 1
      %p321 = scmp.eq.s32.totalorder %s21, 3
      %p322 = scmp.ne.s32.totalorder %s317, %s319
      %p323 = scmp.eq.s32.totalorder %s21, 0
      %p324 = por %p322, %p323
      %p325 = scmp.ne.s32.totalorder %s317, %s319
      %p326 = scmp.eq.s32.totalorder %s26, 3
      %p327 = por %p325, %p326
      %p328 = scmp.ne.s32.totalorder %s319, %s320
      %p329 = scmp.eq.s32.totalorder %s26, 0
      %p330 = por %p328, %p329
      %p331 = scmp.ne.s32.totalorder %s319, %s320
      %p332 = scmp.eq.s32.totalorder %s27, 3
      %p333 = por %p331, %p332
      %p335 = scmp.ne.s32.totalorder %s320, %s334
      %p336 = scmp.eq.s32.totalorder %s27, 0
      %p337 = por %p335, %p336
      %s338 = ssub.s32 %s28, %s40
      %p339 = scmp.eq.s32.totalorder %s338, 0
      %s341 = sadd.s32 %s340, 1
      %s342 = scalar_select %p339, %s340, %s341
      %p345 = pneg %p339
      %p346 = scmp.eq.s32.totalorder %s21, 3
      %p347 = por %p345, %p346
      %p348 = scmp.ne.s32.totalorder %s340, %s343
      %p349 = scmp.eq.s32.totalorder %s21, 0
      %p350 = por %p348, %p349
      %p351 = scmp.ne.s32.totalorder %s340, %s343
      %p352 = scmp.eq.s32.totalorder %s26, 3
      %p353 = por %p351, %p352
      %p354 = scmp.ne.s32.totalorder %s343, %s344
      %p355 = scmp.eq.s32.totalorder %s26, 0
      %p356 = por %p354, %p355
      %p357 = scmp.ne.s32.totalorder %s343, %s344
      %p358 = scmp.eq.s32.totalorder %s27, 3
      %p359 = por %p357, %p358
      %p361 = scmp.ne.s32.totalorder %s344, %s360
      %p362 = scmp.eq.s32.totalorder %s27, 0
      %p363 = por %p361, %p362
      %p364 = scmp.le.s32.totalorder 1, %s21
      %p365 = scmp.lt.s32.totalorder %s21, 5
      %p366 = pnand %p364, %p365
      %p367 = pneg %p366
      // Predicated region
      $region9: #{tpu_custom_call.1} parent=5 // pred_check
        _
      $region10: #{tpu_custom_call.1} parent=5 // pred_check_branch
        %369 = sbr.rel (%p366) target = $region12
      $region11: #{tpu_custom_call.1} parent=5 // pred_region
        %s370 = ssub.s32 %s21, 1
        // Predicated region
        $region13: #{tpu_custom_call.1} parent=11 // pred_check
          %p371 = pneg %p106
        $region14: #{tpu_custom_call.1} parent=11 // pred_check_branch
          %373 = sbr.rel (%p371) target = $region16
        $region15: #{tpu_custom_call.1} parent=11 // pred_region
          _
        $region16: #{tpu_custom_call.1} parent=11 // pred_fallthru
          _
        // Predicated region
        $region17: #{tpu_custom_call.1} parent=11 // pred_check
          %p374 = pneg %p309
        $region18: #{tpu_custom_call.1} parent=11 // pred_check_branch
          %376 = sbr.rel (%p374) target = $region20
        $region19: #{tpu_custom_call.1} parent=11 // pred_region
          _
        $region20: #{tpu_custom_call.1} parent=11 // pred_fallthru
          _
        // Predicated region
        $region21: #{tpu_custom_call.1} parent=11 // pred_check
          %p377 = pneg %p330
        $region22: #{tpu_custom_call.1} parent=11 // pred_check_branch
          %379 = sbr.rel (%p377) target = $region24
        $region23: #{tpu_custom_call.1} parent=11 // pred_region
          _
        $region24: #{tpu_custom_call.1} parent=11 // pred_fallthru
          _
      $region12: #{tpu_custom_call.1} parent=5 // pred_fallthru
        _
      %p380 = scmp.lt.s32.totalorder %s21, 4
      // Predicated region
      $region25: #{tpu_custom_call.1} parent=5 // pred_check
        %p381 = pneg %p380
      $region26: #{tpu_custom_call.1} parent=5 // pred_check_branch
        %383 = sbr.rel (%p381) target = $region28
      $region27: #{tpu_custom_call.1} parent=5 // pred_region
        // Predicated region
        $region29: #{tpu_custom_call.1} parent=27 // pred_check
          %p384 = pneg %p53
        $region30: #{tpu_custom_call.1} parent=27 // pred_check_branch
          %386 = sbr.rel (%p384) target = $region32
        $region31: #{tpu_custom_call.1} parent=27 // pred_region
          %p387 = scmp.lt.s32.totalorder %s28, 1
          %s388 = scalar_select %p387, %s28, 1
          %s389 = smul.addr %s388, 8
          %s390 = scalar_lea.vmem %s0, %s389
        $region32: #{tpu_custom_call.1} parent=27 // pred_fallthru
          _
        // Predicated region
        $region33: #{tpu_custom_call.1} parent=27 // pred_check
          %p391 = pneg %p79
        $region34: #{tpu_custom_call.1} parent=27 // pred_check_branch
          %393 = sbr.rel (%p391) target = $region36
        $region35: #{tpu_custom_call.1} parent=27 // pred_region
          %p394 = scmp.lt.s32.totalorder %s28, 1
          %s395 = scalar_select %p394, %s28, 1
          %s396 = scalar_lea.vmem %s1, %s395
        $region36: #{tpu_custom_call.1} parent=27 // pred_fallthru
          _
        // Predicated region
        $region37: #{tpu_custom_call.1} parent=27 // pred_check
          %p397 = pneg %p126
        $region38: #{tpu_custom_call.1} parent=27 // pred_check_branch
          %399 = sbr.rel (%p397) target = $region40
        $region39: #{tpu_custom_call.1} parent=27 // pred_region
          %p400 = scmp.lt.s32.totalorder %s29, 1
          %s401 = scalar_select %p400, %s29, 1
          %s402 = smul.addr %s401, 64
          %s403 = smul.addr %s402, 4
          %s404 = scalar_lea.vmem %s3, %s403
        $region40: #{tpu_custom_call.1} parent=27 // pred_fallthru
          _
        // Predicated region
        $region41: #{tpu_custom_call.1} parent=27 // pred_check
          %p405 = pneg %p152
        $region42: #{tpu_custom_call.1} parent=27 // pred_check_branch
          %407 = sbr.rel (%p405) target = $region44
        $region43: #{tpu_custom_call.1} parent=27 // pred_region
          %p408 = scmp.lt.s32.totalorder %s29, 1
          %s409 = scalar_select %p408, %s29, 1
          %s410 = smul.addr %s409, 4
          %s411 = scalar_lea.vmem %s4, %s410
        $region44: #{tpu_custom_call.1} parent=27 // pred_fallthru
          _
        // Predicated region
        $region45: #{tpu_custom_call.1} parent=27 // pred_check
          %p412 = pneg %p178
        $region46: #{tpu_custom_call.1} parent=27 // pred_check_branch
          %414 = sbr.rel (%p412) target = $region48
        $region47: #{tpu_custom_call.1} parent=27 // pred_region
          %p415 = scmp.lt.s32.totalorder %s29, 1
          %s416 = scalar_select %p415, %s29, 1
          %s417 = smul.addr %s416, 16
          %s418 = smul.addr %s417, 4
          %s419 = scalar_lea.vmem %s5, %s418
        $region48: #{tpu_custom_call.1} parent=27 // pred_fallthru
          _
        // Predicated region
        $region49: #{tpu_custom_call.1} parent=27 // pred_check
          %p420 = pneg %p204
        $region50: #{tpu_custom_call.1} parent=27 // pred_check_branch
          %422 = sbr.rel (%p420) target = $region52
        $region51: #{tpu_custom_call.1} parent=27 // pred_region
          %p423 = scmp.lt.s32.totalorder %s29, 1
          %s424 = scalar_select %p423, %s29, 1
          %s425 = smul.addr %s424, 32
          %s426 = smul.addr %s425, 4
          %s427 = scalar_lea.vmem %s6, %s426
        $region52: #{tpu_custom_call.1} parent=27 // pred_fallthru
          _
        // Predicated region
        $region53: #{tpu_custom_call.1} parent=27 // pred_check
          %p428 = pneg %p230
        $region54: #{tpu_custom_call.1} parent=27 // pred_check_branch
          %430 = sbr.rel (%p428) target = $region56
        $region55: #{tpu_custom_call.1} parent=27 // pred_region
          %p431 = scmp.lt.s32.totalorder %s29, 1
          %s432 = scalar_select %p431, %s29, 1
          %s433 = smul.addr %s432, 2
          %s434 = scalar_lea.vmem %s7, %s433
        $region56: #{tpu_custom_call.1} parent=27 // pred_fallthru
          _
        // Predicated region
        $region57: #{tpu_custom_call.1} parent=27 // pred_check
          %p435 = pneg %p256
        $region58: #{tpu_custom_call.1} parent=27 // pred_check_branch
          %437 = sbr.rel (%p435) target = $region60
        $region59: #{tpu_custom_call.1} parent=27 // pred_region
          %p438 = scmp.lt.s32.totalorder %s29, 1
          %s439 = scalar_select %p438, %s29, 1
          %s440 = smul.addr %s439, 32
          %s441 = smul.addr %s440, 4
          %s442 = scalar_lea.vmem %s8, %s441
        $region60: #{tpu_custom_call.1} parent=27 // pred_fallthru
          _
        // Predicated region
        $region61: #{tpu_custom_call.1} parent=27 // pred_check
          %p443 = pneg %p282
        $region62: #{tpu_custom_call.1} parent=27 // pred_check_branch
          %445 = sbr.rel (%p443) target = $region64
        $region63: #{tpu_custom_call.1} parent=27 // pred_region
          %p446 = scmp.lt.s32.totalorder %s29, 1
          %s447 = scalar_select %p446, %s29, 1
          %s448 = smul.addr %s447, 8
          %s449 = scalar_lea.vmem %s9, %s448
        $region64: #{tpu_custom_call.1} parent=27 // pred_fallthru
          _
      $region28: #{tpu_custom_call.1} parent=5 // pred_fallthru
        _
      %p450 = scmp.le.s32.totalorder 1, %s21
      %p451 = scmp.lt.s32.totalorder %s21, 5
      %p452 = pnand %p450, %p451
      %p453 = pneg %p452
      // Predicated region
      $region65: #{tpu_custom_call.1} parent=5 // pred_check
        _
      $region66: #{tpu_custom_call.1} parent=5 // pred_check_branch
        %455 = sbr.rel (%p452) target = $region68
      $region67: #{tpu_custom_call.1} parent=5 // pred_region
        %s456 = ssub.s32 %s21, 1
        %p457 = scmp.lt.s32.totalorder %s30, 1
        %s458 = scalar_select %p457, %s30, 1
        %s459 = smul.addr %s458, 8
        %s460 = scalar_lea.vmem %s0, %s459
        %p461 = pneg %p59
        %p462 = pneg %p56
        %p463 = scmp.lt.s32.totalorder %s30, 1
        %s464 = scalar_select %p463, %s30, 1
        %s465 = scalar_lea.vmem %s1, %s464
        %p466 = pneg %p85
        %p467 = pneg %p82
        %p468 = pneg %p106
        %p469 = pneg %p103
        %p470 = scmp.lt.s32.totalorder %s31, 1
        %s471 = scalar_select %p470, %s31, 1
        %s472 = smul.addr %s471, 64
        %s473 = smul.addr %s472, 4
        %s474 = scalar_lea.vmem %s3, %s473
        %p475 = pneg %p132
        %p476 = pneg %p129
        %p477 = scmp.lt.s32.totalorder %s31, 1
        %s478 = scalar_select %p477, %s31, 1
        %s479 = smul.addr %s478, 4
        %s480 = scalar_lea.vmem %s4, %s479
        %p481 = pneg %p158
        %p482 = pneg %p155
        %p483 = scmp.lt.s32.totalorder %s31, 1
        %s484 = scalar_select %p483, %s31, 1
        %s485 = smul.addr %s484, 16
        %s486 = smul.addr %s485, 4
        %s487 = scalar_lea.vmem %s5, %s486
        %p488 = pneg %p184
        %p489 = pneg %p181
        %p490 = scmp.lt.s32.totalorder %s31, 1
        %s491 = scalar_select %p490, %s31, 1
        %s492 = smul.addr %s491, 32
        %s493 = smul.addr %s492, 4
        %s494 = scalar_lea.vmem %s6, %s493
        %p495 = pneg %p210
        %p496 = pneg %p207
        %p497 = scmp.lt.s32.totalorder %s31, 1
        %s498 = scalar_select %p497, %s31, 1
        %s499 = smul.addr %s498, 2
        %s500 = scalar_lea.vmem %s7, %s499
        %p501 = pneg %p236
        %p502 = pneg %p233
        %p503 = scmp.lt.s32.totalorder %s31, 1
        %s504 = scalar_select %p503, %s31, 1
        %s505 = smul.addr %s504, 32
        %s506 = smul.addr %s505, 4
        %s507 = scalar_lea.vmem %s8, %s506
        %p508 = pneg %p262
        %p509 = pneg %p259
        %p510 = scmp.lt.s32.totalorder %s31, 1
        %s511 = scalar_select %p510, %s31, 1
        %s512 = smul.addr %s511, 8
        %s513 = scalar_lea.vmem %s9, %s512
        %p514 = pneg %p288
        %p515 = pneg %p285
        %p516 = pneg %p309
        %p517 = pneg %p306
        %p518 = pneg %p330
        %p519 = pneg %p327
        %p520 = pneg %p356
        %p521 = pneg %p353
        %s522 = sand.u32 %s343, 1
        %s523 = scalar_lea.sflag [#allocation4], %s522
        %s524 = sand.u32 %s343, 1
        %s525 = smul.addr %s524, 8
        %s526 = scalar_lea.vmem [#allocation3], %s525
        %p527 = scmp.lt.s32.totalorder %s30, 1
        %s528 = scalar_select %p527, %s30, 1
        %s529 = smul.addr %s528, 8
        %s530 = scalar_lea.vmem %s0, %s529
        %p531 = scmp.lt.s32.totalorder %s30, 1
        %s532 = scalar_select %p531, %s30, 1
        %s533 = scalar_lea.vmem %s1, %s532
        %p534 = scmp.lt.s32.totalorder %s31, 1
        %s535 = scalar_select %p534, %s31, 1
        %s536 = smul.addr %s535, 64
        %s537 = smul.addr %s536, 4
        %s538 = scalar_lea.vmem %s3, %s537
        %p539 = scmp.lt.s32.totalorder %s31, 1
        %s540 = scalar_select %p539, %s31, 1
        %s541 = smul.addr %s540, 4
        %s542 = scalar_lea.vmem %s4, %s541
        %p543 = scmp.lt.s32.totalorder %s31, 1
        %s544 = scalar_select %p543, %s31, 1
        %s545 = smul.addr %s544, 16
        %s546 = smul.addr %s545, 4
        %s547 = scalar_lea.vmem %s5, %s546
        %p548 = scmp.lt.s32.totalorder %s31, 1
        %s549 = scalar_select %p548, %s31, 1
        %s550 = smul.addr %s549, 32
        %s551 = smul.addr %s550, 4
        %s552 = scalar_lea.vmem %s6, %s551
        %p553 = scmp.lt.s32.totalorder %s31, 1
        %s554 = scalar_select %p553, %s31, 1
        %s555 = smul.addr %s554, 2
        %s556 = scalar_lea.vmem %s7, %s555
        %p557 = scmp.lt.s32.totalorder %s31, 1
        %s558 = scalar_select %p557, %s31, 1
        %s559 = smul.addr %s558, 32
        %s560 = smul.addr %s559, 4
        %s561 = scalar_lea.vmem %s8, %s560
        %p562 = scmp.lt.s32.totalorder %s31, 1
        %s563 = scalar_select %p562, %s31, 1
        %s564 = smul.addr %s563, 8
        %s565 = scalar_lea.vmem %s9, %s564
        %p567 = scmp.eq.s32.totalorder %s31, 0
        // Predicated region
        $region69: #{tpu_custom_call.1} parent=67 // pred_check
          %p568 = pneg %p567
        $region70: #{tpu_custom_call.1} parent=67 // pred_check_branch
          %570 = sbr.rel (%p568) target = $region72
        $region71: #{tpu_custom_call.1} parent=67 // pred_region
          %v571 = vld [vmem:[%s530] sm:$0xff]
          %v572 = vld [vmem:[%s2] sm:$0x1]
          %v573 = vld [vmem:[%s2 + $0x1] sm:$0x1]
          %574 = vadd.xlane.f32.xlu0 %v571
          %v575 = vpop.xlane.xlu0 %574
          %v576 = vrcp.pop 128.0
          %v577 = vmul.f32 %v575, %v576
          %v578 = vsub.f32 %v571, %v577
          %v579 = vmul.f32 %v578, %v578
          %580 = vadd.xlane.f32.xlu0 %v579
          %v581 = vpop.xlane.xlu0 %580
          %v582 = vmul.f32 %v581, %v576
          %v583 = vadd.f32 %v582, 1e-12
          %v584 = vrsqrt.pop %v583
          %v585 = vmul.f32 %v578, %v584
          %v586 = vlaneseq
          %v587 = vshrl.u32 %v586, 7
          %v588 = vsub.s32 0, %v587
          %v589 = vrot.slane %v572, %v588
          %v590 = vmul.f32 %v585, %v589
          %v591 = vlaneseq
          %v592 = vshrl.u32 %v591, 7
          %v593 = vsub.s32 0, %v592
          %v594 = vrot.slane %v573, %v593
          %v595 = vadd.f32 %v590, %v594
          %596 = vst [vmem:[#allocation2] sm:$0xff] %v595
        $region72: #{tpu_custom_call.1} parent=67 // pred_fallthru
          _
        %v597 = vld [vmem:[#allocation2] sm:$0xff]
        %v598 = vld [vmem:[%s565] sm:$0xff]
        %v599 = vpack.c.bf16 %v597, %v597
        %v600 = vld [vmem:[%s538] sm:$0xf]
        %v601 = vld [vmem:[%s538 + $0x4] sm:$0xf]
        %v602 = vld [vmem:[%s538 + $0x8] sm:$0xf]
        %v603 = vld [vmem:[%s538 + $0xc] sm:$0xf]
        %v604 = vld [vmem:[%s538 + $0x10] sm:$0xf]
        %v605 = vld [vmem:[%s538 + $0x14] sm:$0xf]
        %v606 = vld [vmem:[%s538 + $0x18] sm:$0xf]
        %v607 = vld [vmem:[%s538 + $0x1c] sm:$0xf]
        %v608 = vld [vmem:[%s538 + $0x20] sm:$0xf]
        %v609 = vld [vmem:[%s538 + $0x24] sm:$0xf]
        %v610 = vld [vmem:[%s538 + $0x28] sm:$0xf]
        %v611 = vld [vmem:[%s538 + $0x2c] sm:$0xf]
        %v612 = vld [vmem:[%s538 + $0x30] sm:$0xf]
        %v613 = vld [vmem:[%s538 + $0x34] sm:$0xf]
        %v614 = vld [vmem:[%s538 + $0x38] sm:$0xf]
        %v615 = vld [vmem:[%s538 + $0x3c] sm:$0xf]
        %v616 = vld [vmem:[%s538 + $0x40] sm:$0xf]
        %v617 = vld [vmem:[%s538 + $0x44] sm:$0xf]
        %v618 = vld [vmem:[%s538 + $0x48] sm:$0xf]
        %v619 = vld [vmem:[%s538 + $0x4c] sm:$0xf]
        %v620 = vld [vmem:[%s538 + $0x50] sm:$0xf]
        %v621 = vld [vmem:[%s538 + $0x54] sm:$0xf]
        %v622 = vld [vmem:[%s538 + $0x58] sm:$0xf]
        %v623 = vld [vmem:[%s538 + $0x5c] sm:$0xf]
        %v624 = vld [vmem:[%s538 + $0x60] sm:$0xf]
        %v625 = vld [vmem:[%s538 + $0x64] sm:$0xf]
        %v626 = vld [vmem:[%s538 + $0x68] sm:$0xf]
        %v627 = vld [vmem:[%s538 + $0x6c] sm:$0xf]
        %v628 = vld [vmem:[%s538 + $0x70] sm:$0xf]
        %v629 = vld [vmem:[%s538 + $0x74] sm:$0xf]
        %v630 = vld [vmem:[%s538 + $0x78] sm:$0xf]
        %v631 = vld [vmem:[%s538 + $0x7c] sm:$0xf]
        %v632 = vld [vmem:[%s538 + $0x80] sm:$0xf]
        %v633 = vld [vmem:[%s538 + $0x84] sm:$0xf]
        %v634 = vld [vmem:[%s538 + $0x88] sm:$0xf]
        %v635 = vld [vmem:[%s538 + $0x8c] sm:$0xf]
        %v636 = vld [vmem:[%s538 + $0x90] sm:$0xf]
        %v637 = vld [vmem:[%s538 + $0x94] sm:$0xf]
        %v638 = vld [vmem:[%s538 + $0x98] sm:$0xf]
        %v639 = vld [vmem:[%s538 + $0x9c] sm:$0xf]
        %v640 = vld [vmem:[%s538 + $0xa0] sm:$0xf]
        %v641 = vld [vmem:[%s538 + $0xa4] sm:$0xf]
        %v642 = vld [vmem:[%s538 + $0xa8] sm:$0xf]
        %v643 = vld [vmem:[%s538 + $0xac] sm:$0xf]
        %v644 = vld [vmem:[%s538 + $0xb0] sm:$0xf]
        %v645 = vld [vmem:[%s538 + $0xb4] sm:$0xf]
        %v646 = vld [vmem:[%s538 + $0xb8] sm:$0xf]
        %v647 = vld [vmem:[%s538 + $0xbc] sm:$0xf]
        %v648 = vld [vmem:[%s538 + $0xc0] sm:$0xf]
        %v649 = vld [vmem:[%s538 + $0xc4] sm:$0xf]
        %v650 = vld [vmem:[%s538 + $0xc8] sm:$0xf]
        %v651 = vld [vmem:[%s538 + $0xcc] sm:$0xf]
        %v652 = vld [vmem:[%s538 + $0xd0] sm:$0xf]
        %v653 = vld [vmem:[%s538 + $0xd4] sm:$0xf]
        %v654 = vld [vmem:[%s538 + $0xd8] sm:$0xf]
        %v655 = vld [vmem:[%s538 + $0xdc] sm:$0xf]
        %v656 = vld [vmem:[%s538 + $0xe0] sm:$0xf]
        %v657 = vld [vmem:[%s538 + $0xe4] sm:$0xf]
        %v658 = vld [vmem:[%s538 + $0xe8] sm:$0xf]
        %v659 = vld [vmem:[%s538 + $0xec] sm:$0xf]
        %v660 = vld [vmem:[%s538 + $0xf0] sm:$0xf]
        %v661 = vld [vmem:[%s538 + $0xf4] sm:$0xf]
        %v662 = vld [vmem:[%s538 + $0xf8] sm:$0xf]
        %v663 = vld [vmem:[%s538 + $0xfc] sm:$0xf]
        %v664 = vld [vmem:[%s542] sm:$0x1]
        %v665 = vld [vmem:[%s542 + $0x1] sm:$0x1]
        %v666 = vld [vmem:[%s542 + $0x2] sm:$0x1]
        %v667 = vld [vmem:[%s542 + $0x3] sm:$0x1]
        %v672 = vlaneseq
        %v673 = vshrl.u32 %v672, 7
        %v674 = vsub.s32 0, %v673
        %v675 = vrot.slane %v664, %v674
        %v676 = vlaneseq
        %v677 = vshrl.u32 %v676, 7
        %v678 = vsub.s32 0, %v677
        %v679 = vrot.slane %v665, %v678
        %v680 = vlaneseq
        %v681 = vshrl.u32 %v680, 7
        %v682 = vsub.s32 0, %v681
        %v683 = vrot.slane %v666, %v682
        %v684 = vlaneseq
        %v685 = vshrl.u32 %v684, 7
        %v686 = vsub.s32 0, %v685
        %v687 = vrot.slane %v667, %v686
        %v708 = vunpack.c.l.b16 %v600
        %v709 = vunpack.c.l.b16 %v601
        %v710 = vunpack.c.l.b16 %v602
        %v711 = vunpack.c.l.b16 %v603
        %v712 = vunpack.c.l.b16 %v604
        %v713 = vunpack.c.l.b16 %v605
        %v714 = vunpack.c.l.b16 %v606
        %v715 = vunpack.c.l.b16 %v607
        %v716 = vunpack.c.l.b16 %v608
        %v717 = vunpack.c.l.b16 %v609
        %v718 = vunpack.c.l.b16 %v610
        %v719 = vunpack.c.l.b16 %v611
        %v720 = vunpack.c.l.b16 %v612
        %v721 = vunpack.c.l.b16 %v613
        %v722 = vunpack.c.l.b16 %v614
        %v723 = vunpack.c.l.b16 %v615
        %v724 = vpack.c.b16 %v709, %v708
        %v725 = vpack.c.b16 %v711, %v710
        %v726 = vpack.c.b16 %v713, %v712
        %v727 = vpack.c.b16 %v715, %v714
        %v728 = vpack.c.b16 %v717, %v716
        %v729 = vpack.c.b16 %v719, %v718
        %v730 = vpack.c.b16 %v721, %v720
        %v731 = vpack.c.b16 %v723, %v722
        %740 = vmatprep.subr.bf16.mxu0 0
        %741 = vmatpush1.bf16.msra.mxu0 %v724
        %742 = vmatprep.subr.bf16.mxu0 0
        %743 = vmatpush1.bf16.msra.mxu0 %v725
        %744 = vmatprep.subr.bf16.mxu0 0
        %745 = vmatpush1.bf16.msra.mxu0 %v726
        %746 = vmatprep.subr.bf16.mxu0 0
        %747 = vmatpush1.bf16.msra.mxu0 %v727
        %748 = vmatprep.subr.bf16.mxu0 0
        %749 = vmatpush1.bf16.msra.mxu0 %v728
        %750 = vmatprep.subr.bf16.mxu0 0
        %751 = vmatpush1.bf16.msra.mxu0 %v729
        %752 = vmatprep.subr.bf16.mxu0 0
        %753 = vmatpush1.bf16.msra.mxu0 %v730
        %754 = vmatprep.subr.bf16.mxu0 0
        %755 = vmatpush1.bf16.msra.mxu0 %v731
        %756 = vmatprep.subr.bf16.mxu0 0
        %757 = vmatpush1.bf16.msra.mxu0 0
        %758 = vmatprep.subr.bf16.mxu0 0
        %759 = vmatpush1.bf16.msra.mxu0 0
        %760 = vmatprep.subr.bf16.mxu0 0
        %761 = vmatpush1.bf16.msra.mxu0 0
        %762 = vmatprep.subr.bf16.mxu0 0
        %763 = vmatpush1.bf16.msra.mxu0 0
        %764 = vmatprep.subr.bf16.mxu0 0
        %765 = vmatpush1.bf16.msra.mxu0 0
        %766 = vmatprep.subr.bf16.mxu0 0
        %767 = vmatpush1.bf16.msra.mxu0 0
        %768 = vmatprep.subr.bf16.mxu0 0
        %769 = vmatpush1.bf16.msra.mxu0 0
        %770 = vmatprep.subr.bf16.mxu0 0
        %771 = vmatpush1.bf16.msra.mxu0 0
        %772 = vmatprep.mubr.bf16.mxu0 0
        %773 = vmatmul.mubr.bf16.gmra.mrb[0].mxu0 %v599
        %v774 = vpop.f32.mrb[0].mxu0
        %v775 = vadd.f32 %v675, %v774
        %v776 = vpop.f32.mrb[0].mxu0
        %v777 = vpop.f32.mrb[0].mxu0
        %v778 = vpop.f32.mrb[0].mxu0
        %779 = vdwg.mxu0
        %v796 = vunpack.c.l.b16 %v616
        %v797 = vunpack.c.l.b16 %v617
        %v798 = vunpack.c.l.b16 %v618
        %v799 = vunpack.c.l.b16 %v619
        %v800 = vunpack.c.l.b16 %v620
        %v801 = vunpack.c.l.b16 %v621
        %v802 = vunpack.c.l.b16 %v622
        %v803 = vunpack.c.l.b16 %v623
        %v804 = vunpack.c.l.b16 %v624
        %v805 = vunpack.c.l.b16 %v625
        %v806 = vunpack.c.l.b16 %v626
        %v807 = vunpack.c.l.b16 %v627
        %v808 = vunpack.c.l.b16 %v628
        %v809 = vunpack.c.l.b16 %v629
        %v810 = vunpack.c.l.b16 %v630
        %v811 = vunpack.c.l.b16 %v631
        %v812 = vpack.c.b16 %v797, %v796
        %v813 = vpack.c.b16 %v799, %v798
        %v814 = vpack.c.b16 %v801, %v800
        %v815 = vpack.c.b16 %v803, %v802
        %v816 = vpack.c.b16 %v805, %v804
        %v817 = vpack.c.b16 %v807, %v806
        %v818 = vpack.c.b16 %v809, %v808
        %v819 = vpack.c.b16 %v811, %v810
        %828 = vmatprep.subr.bf16.mxu0 0
        %829 = vmatpush1.bf16.msra.mxu0 %v812
        %830 = vmatprep.subr.bf16.mxu0 0
        %831 = vmatpush1.bf16.msra.mxu0 %v813
        %832 = vmatprep.subr.bf16.mxu0 0
        %833 = vmatpush1.bf16.msra.mxu0 %v814
        %834 = vmatprep.subr.bf16.mxu0 0
        %835 = vmatpush1.bf16.msra.mxu0 %v815
        %836 = vmatprep.subr.bf16.mxu0 0
        %837 = vmatpush1.bf16.msra.mxu0 %v816
        %838 = vmatprep.subr.bf16.mxu0 0
        %839 = vmatpush1.bf16.msra.mxu0 %v817
        %840 = vmatprep.subr.bf16.mxu0 0
        %841 = vmatpush1.bf16.msra.mxu0 %v818
        %842 = vmatprep.subr.bf16.mxu0 0
        %843 = vmatpush1.bf16.msra.mxu0 %v819
        %844 = vmatprep.subr.bf16.mxu0 0
        %845 = vmatpush1.bf16.msra.mxu0 0
        %846 = vmatprep.subr.bf16.mxu0 0
        %847 = vmatpush1.bf16.msra.mxu0 0
        %848 = vmatprep.subr.bf16.mxu0 0
        %849 = vmatpush1.bf16.msra.mxu0 0
        %850 = vmatprep.subr.bf16.mxu0 0
        %851 = vmatpush1.bf16.msra.mxu0 0
        %852 = vmatprep.subr.bf16.mxu0 0
        %853 = vmatpush1.bf16.msra.mxu0 0
        %854 = vmatprep.subr.bf16.mxu0 0
        %855 = vmatpush1.bf16.msra.mxu0 0
        %856 = vmatprep.subr.bf16.mxu0 0
        %857 = vmatpush1.bf16.msra.mxu0 0
        %858 = vmatprep.subr.bf16.mxu0 0
        %859 = vmatpush1.bf16.msra.mxu0 0
        %860 = vmatprep.mubr.bf16.mxu0 0
        %861 = vmatmul.mubr.bf16.gmra.mrb[0].mxu0 %v599
        %v862 = vpop.f32.mrb[0].mxu0
        %v863 = vadd.f32 %v679, %v862
        %v864 = vpop.f32.mrb[0].mxu0
        %v865 = vpop.f32.mrb[0].mxu0
        %v866 = vpop.f32.mrb[0].mxu0
        %867 = vdwg.mxu0
        %v884 = vunpack.c.l.b16 %v632
        %v885 = vunpack.c.l.b16 %v633
        %v886 = vunpack.c.l.b16 %v634
        %v887 = vunpack.c.l.b16 %v635
        %v888 = vunpack.c.l.b16 %v636
        %v889 = vunpack.c.l.b16 %v637
        %v890 = vunpack.c.l.b16 %v638
        %v891 = vunpack.c.l.b16 %v639
        %v892 = vunpack.c.l.b16 %v640
        %v893 = vunpack.c.l.b16 %v641
        %v894 = vunpack.c.l.b16 %v642
        %v895 = vunpack.c.l.b16 %v643
        %v896 = vunpack.c.l.b16 %v644
        %v897 = vunpack.c.l.b16 %v645
        %v898 = vunpack.c.l.b16 %v646
        %v899 = vunpack.c.l.b16 %v647
        %v900 = vpack.c.b16 %v885, %v884
        %v901 = vpack.c.b16 %v887, %v886
        %v902 = vpack.c.b16 %v889, %v888
        %v903 = vpack.c.b16 %v891, %v890
        %v904 = vpack.c.b16 %v893, %v892
        %v905 = vpack.c.b16 %v895, %v894
        %v906 = vpack.c.b16 %v897, %v896
        %v907 = vpack.c.b16 %v899, %v898
        %916 = vmatprep.subr.bf16.mxu0 0
        %917 = vmatpush1.bf16.msra.mxu0 %v900
        %918 = vmatprep.subr.bf16.mxu0 0
        %919 = vmatpush1.bf16.msra.mxu0 %v901
        %920 = vmatprep.subr.bf16.mxu0 0
        %921 = vmatpush1.bf16.msra.mxu0 %v902
        %922 = vmatprep.subr.bf16.mxu0 0
        %923 = vmatpush1.bf16.msra.mxu0 %v903
        %924 = vmatprep.subr.bf16.mxu0 0
        %925 = vmatpush1.bf16.msra.mxu0 %v904
        %926 = vmatprep.subr.bf16.mxu0 0
        %927 = vmatpush1.bf16.msra.mxu0 %v905
        %928 = vmatprep.subr.bf16.mxu0 0
        %929 = vmatpush1.bf16.msra.mxu0 %v906
        %930 = vmatprep.subr.bf16.mxu0 0
        %931 = vmatpush1.bf16.msra.mxu0 %v907
        %932 = vmatprep.subr.bf16.mxu0 0
        %933 = vmatpush1.bf16.msra.mxu0 0
        %934 = vmatprep.subr.bf16.mxu0 0
        %935 = vmatpush1.bf16.msra.mxu0 0
        %936 = vmatprep.subr.bf16.mxu0 0
        %937 = vmatpush1.bf16.msra.mxu0 0
        %938 = vmatprep.subr.bf16.mxu0 0
        %939 = vmatpush1.bf16.msra.mxu0 0
        %940 = vmatprep.subr.bf16.mxu0 0
        %941 = vmatpush1.bf16.msra.mxu0 0
        %942 = vmatprep.subr.bf16.mxu0 0
        %943 = vmatpush1.bf16.msra.mxu0 0
        %944 = vmatprep.subr.bf16.mxu0 0
        %945 = vmatpush1.bf16.msra.mxu0 0
        %946 = vmatprep.subr.bf16.mxu0 0
        %947 = vmatpush1.bf16.msra.mxu0 0
        %948 = vmatprep.mubr.bf16.mxu0 0
        %949 = vmatmul.mubr.bf16.gmra.mrb[0].mxu0 %v599
        %v950 = vpop.f32.mrb[0].mxu0
        %v951 = vadd.f32 %v683, %v950
        %v952 = vpop.f32.mrb[0].mxu0
        %v953 = vpop.f32.mrb[0].mxu0
        %v954 = vpop.f32.mrb[0].mxu0
        %955 = vdwg.mxu0
        %v972 = vunpack.c.l.b16 %v648
        %v973 = vunpack.c.l.b16 %v649
        %v974 = vunpack.c.l.b16 %v650
        %v975 = vunpack.c.l.b16 %v651
        %v976 = vunpack.c.l.b16 %v652
        %v977 = vunpack.c.l.b16 %v653
        %v978 = vunpack.c.l.b16 %v654
        %v979 = vunpack.c.l.b16 %v655
        %v980 = vunpack.c.l.b16 %v656
        %v981 = vunpack.c.l.b16 %v657
        %v982 = vunpack.c.l.b16 %v658
        %v983 = vunpack.c.l.b16 %v659
        %v984 = vunpack.c.l.b16 %v660
        %v985 = vunpack.c.l.b16 %v661
        %v986 = vunpack.c.l.b16 %v662
        %v987 = vunpack.c.l.b16 %v663
        %v988 = vpack.c.b16 %v973, %v972
        %v989 = vpack.c.b16 %v975, %v974
        %v990 = vpack.c.b16 %v977, %v976
        %v991 = vpack.c.b16 %v979, %v978
        %v992 = vpack.c.b16 %v981, %v980
        %v993 = vpack.c.b16 %v983, %v982
        %v994 = vpack.c.b16 %v985, %v984
        %v995 = vpack.c.b16 %v987, %v986
        %1004 = vmatprep.subr.bf16.mxu0 0
        %1005 = vmatpush1.bf16.msra.mxu0 %v988
        %1006 = vmatprep.subr.bf16.mxu0 0
        %1007 = vmatpush1.bf16.msra.mxu0 %v989
        %1008 = vmatprep.subr.bf16.mxu0 0
        %1009 = vmatpush1.bf16.msra.mxu0 %v990
        %1010 = vmatprep.subr.bf16.mxu0 0
        %1011 = vmatpush1.bf16.msra.mxu0 %v991
        %1012 = vmatprep.subr.bf16.mxu0 0
        %1013 = vmatpush1.bf16.msra.mxu0 %v992
        %1014 = vmatprep.subr.bf16.mxu0 0
        %1015 = vmatpush1.bf16.msra.mxu0 %v993
        %1016 = vmatprep.subr.bf16.mxu0 0
        %1017 = vmatpush1.bf16.msra.mxu0 %v994
        %1018 = vmatprep.subr.bf16.mxu0 0
        %1019 = vmatpush1.bf16.msra.mxu0 %v995
        %1020 = vmatprep.subr.bf16.mxu0 0
        %1021 = vmatpush1.bf16.msra.mxu0 0
        %1022 = vmatprep.subr.bf16.mxu0 0
        %1023 = vmatpush1.bf16.msra.mxu0 0
        %1024 = vmatprep.subr.bf16.mxu0 0
        %1025 = vmatpush1.bf16.msra.mxu0 0
        %1026 = vmatprep.subr.bf16.mxu0 0
        %1027 = vmatpush1.bf16.msra.mxu0 0
        %1028 = vmatprep.subr.bf16.mxu0 0
        %1029 = vmatpush1.bf16.msra.mxu0 0
        %1030 = vmatprep.subr.bf16.mxu0 0
        %1031 = vmatpush1.bf16.msra.mxu0 0
        %1032 = vmatprep.subr.bf16.mxu0 0
        %1033 = vmatpush1.bf16.msra.mxu0 0
        %1034 = vmatprep.subr.bf16.mxu0 0
        %1035 = vmatpush1.bf16.msra.mxu0 0
        %1036 = vmatprep.mubr.bf16.mxu0 0
        %1037 = vmatmul.mubr.bf16.gmra.mrb[0].mxu0 %v599
        %v1038 = vpop.f32.mrb[0].mxu0
        %v1039 = vadd.f32 %v687, %v1038
        %v1040 = vpop.f32.mrb[0].mxu0
        %v1041 = vpop.f32.mrb[0].mxu0
        %v1042 = vpop.f32.mrb[0].mxu0
        %1043 = vdwg.mxu0
        %v1044 = vpack.c.bf16 %v775, %v775
        %v1045 = vpack.c.bf16 %v863, %v863
        %v1046 = vpack.c.bf16 %v951, %v951
        %v1047 = vpack.c.bf16 %v1039, %v1039
        %1049 = vrot.lane.b32.xlu0 %v1044, 96
        %v1050 = vpop.permute.xlu0 %1049
        %vm1051 = vcmask 261120
        %v1053 = vsel %vm1051, %v1044, 0
        %v1056 = vsel %vm1051, %v1050, 0
        %1058 = vmatprep.subr.bf16.mxu0 0
        %1059 = vmatpush1.bf16.xpose.msra.mxu0 %v1056
        %1060 = vmatprep.subr.bf16.mxu0 0
        %1061 = vmatpush1.bf16.xpose.msra.mxu0 0
        %1062 = vmatprep.subr.bf16.mxu0 0
        %1063 = vmatpush1.bf16.xpose.msra.mxu0 0
        %1064 = vmatprep.subr.bf16.mxu0 0
        %1065 = vmatpush1.bf16.xpose.msra.mxu0 0
        %1066 = vmatprep.subr.bf16.mxu0 0
        %1067 = vmatpush1.bf16.xpose.msra.mxu0 0
        %1068 = vmatprep.subr.bf16.mxu0 0
        %1069 = vmatpush1.bf16.xpose.msra.mxu0 0
        %1070 = vmatprep.subr.bf16.mxu0 0
        %1071 = vmatpush1.bf16.xpose.msra.mxu0 0
        %1072 = vmatprep.subr.bf16.mxu0 0
        %1073 = vmatpush1.bf16.xpose.msra.mxu0 0
        %1074 = vmatprep.subr.bf16.mxu0 0
        %1075 = vmatpush1.bf16.xpose.msra.mxu0 0
        %1076 = vmatprep.subr.bf16.mxu0 0
        %1077 = vmatpush1.bf16.xpose.msra.mxu0 0
        %1078 = vmatprep.subr.bf16.mxu0 0
        %1079 = vmatpush1.bf16.xpose.msra.mxu0 0
        %1080 = vmatprep.subr.bf16.mxu0 0
        %1081 = vmatpush1.bf16.xpose.msra.mxu0 0
        %1082 = vmatprep.subr.bf16.mxu0 0
        %1083 = vmatpush1.bf16.xpose.msra.mxu0 0
        %1084 = vmatprep.subr.bf16.mxu0 0
        %1085 = vmatpush1.bf16.xpose.msra.mxu0 0
        %1086 = vmatprep.subr.bf16.mxu0 0
        %1087 = vmatpush1.bf16.xpose.msra.mxu0 0
        %1088 = vmatprep.subr.bf16.mxu0 0
        %1089 = vmatpush1.bf16.xpose.msra.mxu0 0
        %1090 = vmatprep.mubr.bf16.mxu0 0
        %1091 = vmatmul.mubr.bf16.gmra.mrb[0].mxu0 %v1053
        %v1092 = vpop.f32.mrb[0].mxu0
        %v1093 = vadd.f32 0.0, %v1092
        %v1094 = vpop.f32.mrb[0].mxu0
        %v1095 = vpop.f32.mrb[0].mxu0
        %v1096 = vpop.f32.mrb[0].mxu0
        %1097 = vdwg.mxu0
        %1099 = vrot.lane.b32.xlu0 %v1045, 96
        %v1100 = vpop.permute.xlu0 %1099
        %v1102 = vsel %vm1051, %v1045, 0
        %v1105 = vsel %vm1051, %v1100, 0
        %1107 = vmatprep.subr.bf16.mxu0 0
        %1108 = vmatpush1.bf16.xpose.msra.mxu0 %v1105
        %1109 = vmatprep.subr.bf16.mxu0 0
        %1110 = vmatpush1.bf16.xpose.msra.mxu0 0
        %1111 = vmatprep.subr.bf16.mxu0 0
        %1112 = vmatpush1.bf16.xpose.msra.mxu0 0
        %1113 = vmatprep.subr.bf16.mxu0 0
        %1114 = vmatpush1.bf16.xpose.msra.mxu0 0
        %1115 = vmatprep.subr.bf16.mxu0 0
        %1116 = vmatpush1.bf16.xpose.msra.mxu0 0
        %1117 = vmatprep.subr.bf16.mxu0 0
        %1118 = vmatpush1.bf16.xpose.msra.mxu0 0
        %1119 = vmatprep.subr.bf16.mxu0 0
        %1120 = vmatpush1.bf16.xpose.msra.mxu0 0
        %1121 = vmatprep.subr.bf16.mxu0 0
        %1122 = vmatpush1.bf16.xpose.msra.mxu0 0
        %1123 = vmatprep.subr.bf16.mxu0 0
        %1124 = vmatpush1.bf16.xpose.msra.mxu0 0
        %1125 = vmatprep.subr.bf16.mxu0 0
        %1126 = vmatpush1.bf16.xpose.msra.mxu0 0
        %1127 = vmatprep.subr.bf16.mxu0 0
        %1128 = vmatpush1.bf16.xpose.msra.mxu0 0
        %1129 = vmatprep.subr.bf16.mxu0 0
        %1130 = vmatpush1.bf16.xpose.msra.mxu0 0
        %1131 = vmatprep.subr.bf16.mxu0 0
        %1132 = vmatpush1.bf16.xpose.msra.mxu0 0
        %1133 = vmatprep.subr.bf16.mxu0 0
        %1134 = vmatpush1.bf16.xpose.msra.mxu0 0
        %1135 = vmatprep.subr.bf16.mxu0 0
        %1136 = vmatpush1.bf16.xpose.msra.mxu0 0
        %1137 = vmatprep.subr.bf16.mxu0 0
        %1138 = vmatpush1.bf16.xpose.msra.mxu0 0
        %1139 = vmatprep.mubr.bf16.mxu0 0
        %1140 = vmatmul.mubr.bf16.gmra.mrb[0].mxu0 %v1102
        %v1141 = vpop.f32.mrb[0].mxu0
        %v1142 = vadd.f32 0.0, %v1141
        %v1143 = vpop.f32.mrb[0].mxu0
        %v1144 = vpop.f32.mrb[0].mxu0
        %v1145 = vpop.f32.mrb[0].mxu0
        %1146 = vdwg.mxu0
        %1148 = vrot.lane.b32.xlu0 %v1046, 96
        %v1149 = vpop.permute.xlu0 %1148
        %v1151 = vsel %vm1051, %v1046, 0
        %v1154 = vsel %vm1051, %v1149, 0
        %1156 = vmatprep.subr.bf16.mxu0 0
        %1157 = vmatpush1.bf16.xpose.msra.mxu0 %v1154
        %1158 = vmatprep.subr.bf16.mxu0 0
        %1159 = vmatpush1.bf16.xpose.msra.mxu0 0
        %1160 = vmatprep.subr.bf16.mxu0 0
        %1161 = vmatpush1.bf16.xpose.msra.mxu0 0
        %1162 = vmatprep.subr.bf16.mxu0 0
        %1163 = vmatpush1.bf16.xpose.msra.mxu0 0
        %1164 = vmatprep.subr.bf16.mxu0 0
        %1165 = vmatpush1.bf16.xpose.msra.mxu0 0
        %1166 = vmatprep.subr.bf16.mxu0 0
        %1167 = vmatpush1.bf16.xpose.msra.mxu0 0
        %1168 = vmatprep.subr.bf16.mxu0 0
        %1169 = vmatpush1.bf16.xpose.msra.mxu0 0
        %1170 = vmatprep.subr.bf16.mxu0 0
        %1171 = vmatpush1.bf16.xpose.msra.mxu0 0
        %1172 = vmatprep.subr.bf16.mxu0 0
        %1173 = vmatpush1.bf16.xpose.msra.mxu0 0
        %1174 = vmatprep.subr.bf16.mxu0 0
        %1175 = vmatpush1.bf16.xpose.msra.mxu0 0
        %1176 = vmatprep.subr.bf16.mxu0 0
        %1177 = vmatpush1.bf16.xpose.msra.mxu0 0
        %1178 = vmatprep.subr.bf16.mxu0 0
        %1179 = vmatpush1.bf16.xpose.msra.mxu0 0
        %1180 = vmatprep.subr.bf16.mxu0 0
        %1181 = vmatpush1.bf16.xpose.msra.mxu0 0
        %1182 = vmatprep.subr.bf16.mxu0 0
        %1183 = vmatpush1.bf16.xpose.msra.mxu0 0
        %1184 = vmatprep.subr.bf16.mxu0 0
        %1185 = vmatpush1.bf16.xpose.msra.mxu0 0
        %1186 = vmatprep.subr.bf16.mxu0 0
        %1187 = vmatpush1.bf16.xpose.msra.mxu0 0
        %1188 = vmatprep.mubr.bf16.mxu0 0
        %1189 = vmatmul.mubr.bf16.gmra.mrb[0].mxu0 %v1151
        %v1190 = vpop.f32.mrb[0].mxu0
        %v1191 = vadd.f32 0.0, %v1190
        %v1192 = vpop.f32.mrb[0].mxu0
        %v1193 = vpop.f32.mrb[0].mxu0
        %v1194 = vpop.f32.mrb[0].mxu0
        %1195 = vdwg.mxu0
        %1197 = vrot.lane.b32.xlu0 %v1047, 96
        %v1198 = vpop.permute.xlu0 %1197
        %v1200 = vsel %vm1051, %v1047, 0
        %v1203 = vsel %vm1051, %v1198, 0
        %1205 = vmatprep.subr.bf16.mxu0 0
        %1206 = vmatpush1.bf16.xpose.msra.mxu0 %v1203
        %1207 = vmatprep.subr.bf16.mxu0 0
        %1208 = vmatpush1.bf16.xpose.msra.mxu0 0
        %1209 = vmatprep.subr.bf16.mxu0 0
        %1210 = vmatpush1.bf16.xpose.msra.mxu0 0
        %1211 = vmatprep.subr.bf16.mxu0 0
        %1212 = vmatpush1.bf16.xpose.msra.mxu0 0
        %1213 = vmatprep.subr.bf16.mxu0 0
        %1214 = vmatpush1.bf16.xpose.msra.mxu0 0
        %1215 = vmatprep.subr.bf16.mxu0 0
        %1216 = vmatpush1.bf16.xpose.msra.mxu0 0
        %1217 = vmatprep.subr.bf16.mxu0 0
        %1218 = vmatpush1.bf16.xpose.msra.mxu0 0
        %1219 = vmatprep.subr.bf16.mxu0 0
        %1220 = vmatpush1.bf16.xpose.msra.mxu0 0
        %1221 = vmatprep.subr.bf16.mxu0 0
        %1222 = vmatpush1.bf16.xpose.msra.mxu0 0
        %1223 = vmatprep.subr.bf16.mxu0 0
        %1224 = vmatpush1.bf16.xpose.msra.mxu0 0
        %1225 = vmatprep.subr.bf16.mxu0 0
        %1226 = vmatpush1.bf16.xpose.msra.mxu0 0
        %1227 = vmatprep.subr.bf16.mxu0 0
        %1228 = vmatpush1.bf16.xpose.msra.mxu0 0
        %1229 = vmatprep.subr.bf16.mxu0 0
        %1230 = vmatpush1.bf16.xpose.msra.mxu0 0
        %1231 = vmatprep.subr.bf16.mxu0 0
        %1232 = vmatpush1.bf16.xpose.msra.mxu0 0
        %1233 = vmatprep.subr.bf16.mxu0 0
        %1234 = vmatpush1.bf16.xpose.msra.mxu0 0
        %1235 = vmatprep.subr.bf16.mxu0 0
        %1236 = vmatpush1.bf16.xpose.msra.mxu0 0
        %1237 = vmatprep.mubr.bf16.mxu0 0
        %1238 = vmatmul.mubr.bf16.gmra.mrb[0].mxu0 %v1200
        %v1239 = vpop.f32.mrb[0].mxu0
        %v1240 = vadd.f32 0.0, %v1239
        %v1241 = vpop.f32.mrb[0].mxu0
        %v1242 = vpop.f32.mrb[0].mxu0
        %v1243 = vpop.f32.mrb[0].mxu0
        %1244 = vdwg.mxu0
        %v1245 = vmul.f32 %v1093, 0.17677669
        %v1246 = vmul.f32 %v1142, 0.17677669
        %v1247 = vmul.f32 %v1191, 0.17677669
        %v1248 = vmul.f32 %v1240, 0.17677669
        %v1249 = vld [vmem:[%s533] sm:$0x1]
        %v1251 = vlaneseq
        %v1252 = vshrl.u32 %v1251, 7
        %v1253 = vsub.s32 0, %v1252
        %v1254 = vrot.slane %v1249, %v1253
        %v1256 = vadd.f32 %v1245, %v1254
        %v1257 = vadd.f32 %v1246, %v1254
        %v1258 = vadd.f32 %v1247, %v1254
        %v1259 = vadd.f32 %v1248, %v1254
        %vm1260 = vcmask 64512
        %v1261 = vsel %vm1260, %v1256, -inf
        %1262 = vmax.xlane.f32.xlu0 %v1261
        %v1263 = vpop.xlane.xlu0 %1262
        %v1264 = vsel %vm1260, %v1257, -inf
        %1265 = vmax.xlane.f32.xlu0 %v1264
        %v1266 = vpop.xlane.xlu0 %1265
        %v1267 = vsel %vm1260, %v1258, -inf
        %1268 = vmax.xlane.f32.xlu0 %v1267
        %v1269 = vpop.xlane.xlu0 %1268
        %v1270 = vsel %vm1260, %v1259, -inf
        %1271 = vmax.xlane.f32.xlu0 %v1270
        %v1272 = vpop.xlane.xlu0 %1271
        %v1273 = vsub.f32 %v1256, %v1263
        %v1274 = vsub.f32 %v1257, %v1266
        %v1275 = vsub.f32 %v1258, %v1269
        %v1276 = vsub.f32 %v1259, %v1272
        %v1277 = vmul.f32 %v1273, 1.442695
        %v1278 = vpow.pop %v1277
        %v1279 = vmul.f32 %v1274, 1.442695
        %v1280 = vpow.pop %v1279
        %v1281 = vmul.f32 %v1275, 1.442695
        %v1282 = vpow.pop %v1281
        %v1283 = vmul.f32 %v1276, 1.442695
        %v1284 = vpow.pop %v1283
        %v1285 = vsel %vm1260, %v1278, 0.0
        %1286 = vadd.xlane.f32.xlu0 %v1285
        %v1287 = vpop.xlane.xlu0 %1286
        %v1288 = vsel %vm1260, %v1280, 0.0
        %1289 = vadd.xlane.f32.xlu0 %v1288
        %v1290 = vpop.xlane.xlu0 %1289
        %v1291 = vsel %vm1260, %v1282, 0.0
        %1292 = vadd.xlane.f32.xlu0 %v1291
        %v1293 = vpop.xlane.xlu0 %1292
        %v1294 = vsel %vm1260, %v1284, 0.0
        %1295 = vadd.xlane.f32.xlu0 %v1294
        %v1296 = vpop.xlane.xlu0 %1295
        %v1297 = vrcp.pop %v1287
        %v1298 = vrcp.pop %v1290
        %v1299 = vrcp.pop %v1293
        %v1300 = vrcp.pop %v1296
        %v1301 = vmul.f32 %v1278, %v1297
        %v1302 = vmul.f32 %v1280, %v1298
        %v1303 = vmul.f32 %v1282, %v1299
        %v1304 = vmul.f32 %v1284, %v1300
        %v1305 = vpack.c.bf16 %v1301, %v1301
        %v1306 = vpack.c.bf16 %v1302, %v1302
        %v1307 = vpack.c.bf16 %v1303, %v1303
        %v1308 = vpack.c.bf16 %v1304, %v1304
        %1309 = vrot.lane.b32.xlu0 %v1044, 64
        %v1310 = vpop.permute.xlu0 %1309
        %v1312 = vsel %vm1260, %v1305, 0
        %vm1314 = vcmask 1043456
        %v1316 = vsel %vm1314, %v1310, 0
        %1318 = vmatprep.subr.bf16.mxu0 0
        %1319 = vmatpush1.bf16.msra.mxu0 %v1316
        %1320 = vmatprep.subr.bf16.mxu0 0
        %1321 = vmatpush1.bf16.msra.mxu0 0
        %1322 = vmatprep.subr.bf16.mxu0 0
        %1323 = vmatpush1.bf16.msra.mxu0 0
        %1324 = vmatprep.subr.bf16.mxu0 0
        %1325 = vmatpush1.bf16.msra.mxu0 0
        %1326 = vmatprep.subr.bf16.mxu0 0
        %1327 = vmatpush1.bf16.msra.mxu0 0
        %1328 = vmatprep.subr.bf16.mxu0 0
        %1329 = vmatpush1.bf16.msra.mxu0 0
        %1330 = vmatprep.subr.bf16.mxu0 0
        %1331 = vmatpush1.bf16.msra.mxu0 0
        %1332 = vmatprep.subr.bf16.mxu0 0
        %1333 = vmatpush1.bf16.msra.mxu0 0
        %1334 = vmatprep.subr.bf16.mxu0 0
        %1335 = vmatpush1.bf16.msra.mxu0 0
        %1336 = vmatprep.subr.bf16.mxu0 0
        %1337 = vmatpush1.bf16.msra.mxu0 0
        %1338 = vmatprep.subr.bf16.mxu0 0
        %1339 = vmatpush1.bf16.msra.mxu0 0
        %1340 = vmatprep.subr.bf16.mxu0 0
        %1341 = vmatpush1.bf16.msra.mxu0 0
        %1342 = vmatprep.subr.bf16.mxu0 0
        %1343 = vmatpush1.bf16.msra.mxu0 0
        %1344 = vmatprep.subr.bf16.mxu0 0
        %1345 = vmatpush1.bf16.msra.mxu0 0
        %1346 = vmatprep.subr.bf16.mxu0 0
        %1347 = vmatpush1.bf16.msra.mxu0 0
        %1348 = vmatprep.subr.bf16.mxu0 0
        %1349 = vmatpush1.bf16.msra.mxu0 0
        %1350 = vmatprep.mubr.bf16.mxu0 0
        %1351 = vmatmul.mubr.bf16.gmra.mrb[0].mxu0 %v1312
        %v1352 = vpop.f32.mrb[0].mxu0
        %v1353 = vadd.f32 0.0, %v1352
        %v1354 = vpop.f32.mrb[0].mxu0
        %v1355 = vpop.f32.mrb[0].mxu0
        %v1356 = vpop.f32.mrb[0].mxu0
        %1357 = vdwg.mxu0
        %1358 = vrot.lane.b32.xlu0 %v1045, 64
        %v1359 = vpop.permute.xlu0 %1358
        %v1361 = vsel %vm1260, %v1306, 0
        %v1364 = vsel %vm1314, %v1359, 0
        %1366 = vmatprep.subr.bf16.mxu0 0
        %1367 = vmatpush1.bf16.msra.mxu0 %v1364
        %1368 = vmatprep.subr.bf16.mxu0 0
        %1369 = vmatpush1.bf16.msra.mxu0 0
        %1370 = vmatprep.subr.bf16.mxu0 0
        %1371 = vmatpush1.bf16.msra.mxu0 0
        %1372 = vmatprep.subr.bf16.mxu0 0
        %1373 = vmatpush1.bf16.msra.mxu0 0
        %1374 = vmatprep.subr.bf16.mxu0 0
        %1375 = vmatpush1.bf16.msra.mxu0 0
        %1376 = vmatprep.subr.bf16.mxu0 0
        %1377 = vmatpush1.bf16.msra.mxu0 0
        %1378 = vmatprep.subr.bf16.mxu0 0
        %1379 = vmatpush1.bf16.msra.mxu0 0
        %1380 = vmatprep.subr.bf16.mxu0 0
        %1381 = vmatpush1.bf16.msra.mxu0 0
        %1382 = vmatprep.subr.bf16.mxu0 0
        %1383 = vmatpush1.bf16.msra.mxu0 0
        %1384 = vmatprep.subr.bf16.mxu0 0
        %1385 = vmatpush1.bf16.msra.mxu0 0
        %1386 = vmatprep.subr.bf16.mxu0 0
        %1387 = vmatpush1.bf16.msra.mxu0 0
        %1388 = vmatprep.subr.bf16.mxu0 0
        %1389 = vmatpush1.bf16.msra.mxu0 0
        %1390 = vmatprep.subr.bf16.mxu0 0
        %1391 = vmatpush1.bf16.msra.mxu0 0
        %1392 = vmatprep.subr.bf16.mxu0 0
        %1393 = vmatpush1.bf16.msra.mxu0 0
        %1394 = vmatprep.subr.bf16.mxu0 0
        %1395 = vmatpush1.bf16.msra.mxu0 0
        %1396 = vmatprep.subr.bf16.mxu0 0
        %1397 = vmatpush1.bf16.msra.mxu0 0
        %1398 = vmatprep.mubr.bf16.mxu0 0
        %1399 = vmatmul.mubr.bf16.gmra.mrb[0].mxu0 %v1361
        %v1400 = vpop.f32.mrb[0].mxu0
        %v1401 = vadd.f32 0.0, %v1400
        %v1402 = vpop.f32.mrb[0].mxu0
        %v1403 = vpop.f32.mrb[0].mxu0
        %v1404 = vpop.f32.mrb[0].mxu0
        %1405 = vdwg.mxu0
        %1406 = vrot.lane.b32.xlu0 %v1046, 64
        %v1407 = vpop.permute.xlu0 %1406
        %v1409 = vsel %vm1260, %v1307, 0
        %v1412 = vsel %vm1314, %v1407, 0
        %1414 = vmatprep.subr.bf16.mxu0 0
        %1415 = vmatpush1.bf16.msra.mxu0 %v1412
        %1416 = vmatprep.subr.bf16.mxu0 0
        %1417 = vmatpush1.bf16.msra.mxu0 0
        %1418 = vmatprep.subr.bf16.mxu0 0
        %1419 = vmatpush1.bf16.msra.mxu0 0
        %1420 = vmatprep.subr.bf16.mxu0 0
        %1421 = vmatpush1.bf16.msra.mxu0 0
        %1422 = vmatprep.subr.bf16.mxu0 0
        %1423 = vmatpush1.bf16.msra.mxu0 0
        %1424 = vmatprep.subr.bf16.mxu0 0
        %1425 = vmatpush1.bf16.msra.mxu0 0
        %1426 = vmatprep.subr.bf16.mxu0 0
        %1427 = vmatpush1.bf16.msra.mxu0 0
        %1428 = vmatprep.subr.bf16.mxu0 0
        %1429 = vmatpush1.bf16.msra.mxu0 0
        %1430 = vmatprep.subr.bf16.mxu0 0
        %1431 = vmatpush1.bf16.msra.mxu0 0
        %1432 = vmatprep.subr.bf16.mxu0 0
        %1433 = vmatpush1.bf16.msra.mxu0 0
        %1434 = vmatprep.subr.bf16.mxu0 0
        %1435 = vmatpush1.bf16.msra.mxu0 0
        %1436 = vmatprep.subr.bf16.mxu0 0
        %1437 = vmatpush1.bf16.msra.mxu0 0
        %1438 = vmatprep.subr.bf16.mxu0 0
        %1439 = vmatpush1.bf16.msra.mxu0 0
        %1440 = vmatprep.subr.bf16.mxu0 0
        %1441 = vmatpush1.bf16.msra.mxu0 0
        %1442 = vmatprep.subr.bf16.mxu0 0
        %1443 = vmatpush1.bf16.msra.mxu0 0
        %1444 = vmatprep.subr.bf16.mxu0 0
        %1445 = vmatpush1.bf16.msra.mxu0 0
        %1446 = vmatprep.mubr.bf16.mxu0 0
        %1447 = vmatmul.mubr.bf16.gmra.mrb[0].mxu0 %v1409
        %v1448 = vpop.f32.mrb[0].mxu0
        %v1449 = vadd.f32 0.0, %v1448
        %v1450 = vpop.f32.mrb[0].mxu0
        %v1451 = vpop.f32.mrb[0].mxu0
        %v1452 = vpop.f32.mrb[0].mxu0
        %1453 = vdwg.mxu0
        %1454 = vrot.lane.b32.xlu0 %v1047, 64
        %v1455 = vpop.permute.xlu0 %1454
        %v1457 = vsel %vm1260, %v1308, 0
        %v1460 = vsel %vm1314, %v1455, 0
        %1462 = vmatprep.subr.bf16.mxu0 0
        %1463 = vmatpush1.bf16.msra.mxu0 %v1460
        %1464 = vmatprep.subr.bf16.mxu0 0
        %1465 = vmatpush1.bf16.msra.mxu0 0
        %1466 = vmatprep.subr.bf16.mxu0 0
        %1467 = vmatpush1.bf16.msra.mxu0 0
        %1468 = vmatprep.subr.bf16.mxu0 0
        %1469 = vmatpush1.bf16.msra.mxu0 0
        %1470 = vmatprep.subr.bf16.mxu0 0
        %1471 = vmatpush1.bf16.msra.mxu0 0
        %1472 = vmatprep.subr.bf16.mxu0 0
        %1473 = vmatpush1.bf16.msra.mxu0 0
        %1474 = vmatprep.subr.bf16.mxu0 0
        %1475 = vmatpush1.bf16.msra.mxu0 0
        %1476 = vmatprep.subr.bf16.mxu0 0
        %1477 = vmatpush1.bf16.msra.mxu0 0
        %1478 = vmatprep.subr.bf16.mxu0 0
        %1479 = vmatpush1.bf16.msra.mxu0 0
        %1480 = vmatprep.subr.bf16.mxu0 0
        %1481 = vmatpush1.bf16.msra.mxu0 0
        %1482 = vmatprep.subr.bf16.mxu0 0
        %1483 = vmatpush1.bf16.msra.mxu0 0
        %1484 = vmatprep.subr.bf16.mxu0 0
        %1485 = vmatpush1.bf16.msra.mxu0 0
        %1486 = vmatprep.subr.bf16.mxu0 0
        %1487 = vmatpush1.bf16.msra.mxu0 0
        %1488 = vmatprep.subr.bf16.mxu0 0
        %1489 = vmatpush1.bf16.msra.mxu0 0
        %1490 = vmatprep.subr.bf16.mxu0 0
        %1491 = vmatpush1.bf16.msra.mxu0 0
        %1492 = vmatprep.subr.bf16.mxu0 0
        %1493 = vmatpush1.bf16.msra.mxu0 0
        %1494 = vmatprep.mubr.bf16.mxu0 0
        %1495 = vmatmul.mubr.bf16.gmra.mrb[0].mxu0 %v1457
        %v1496 = vpop.f32.mrb[0].mxu0
        %v1497 = vadd.f32 0.0, %v1496
        %v1498 = vpop.f32.mrb[0].mxu0
        %v1499 = vpop.f32.mrb[0].mxu0
        %v1500 = vpop.f32.mrb[0].mxu0
        %1501 = vdwg.mxu0
        %v1502 = vpack.c.bf16 %v1353, %v1353
        %v1503 = vpack.c.bf16 %v1401, %v1401
        %v1504 = vpack.c.bf16 %v1449, %v1449
        %v1505 = vpack.c.bf16 %v1497, %v1497
        %v1506 = vld [vmem:[%s547] sm:$0xf]
        %v1507 = vld [vmem:[%s547 + $0x4] sm:$0xf]
        %v1508 = vld [vmem:[%s547 + $0x8] sm:$0xf]
        %v1509 = vld [vmem:[%s547 + $0xc] sm:$0xf]
        %v1510 = vld [vmem:[%s547 + $0x10] sm:$0xf]
        %v1511 = vld [vmem:[%s547 + $0x14] sm:$0xf]
        %v1512 = vld [vmem:[%s547 + $0x18] sm:$0xf]
        %v1513 = vld [vmem:[%s547 + $0x1c] sm:$0xf]
        %v1514 = vld [vmem:[%s547 + $0x20] sm:$0xf]
        %v1515 = vld [vmem:[%s547 + $0x24] sm:$0xf]
        %v1516 = vld [vmem:[%s547 + $0x28] sm:$0xf]
        %v1517 = vld [vmem:[%s547 + $0x2c] sm:$0xf]
        %v1518 = vld [vmem:[%s547 + $0x30] sm:$0xf]
        %v1519 = vld [vmem:[%s547 + $0x34] sm:$0xf]
        %v1520 = vld [vmem:[%s547 + $0x38] sm:$0xf]
        %v1521 = vld [vmem:[%s547 + $0x3c] sm:$0xf]
        %v1526 = vunpack.c.l.b16 %v1506
        %v1527 = vunpack.c.l.b16 %v1507
        %v1528 = vunpack.c.l.b16 %v1508
        %v1529 = vunpack.c.l.b16 %v1509
        %v1530 = vpack.c.b16 %v1527, %v1526
        %v1531 = vpack.c.b16 %v1529, %v1528
        %v1535 = vsel %vm1051, %v1502, 0
        %1537 = vmatprep.subr.bf16.mxu0 0
        %1538 = vmatpush1.bf16.msra.mxu0 %v1530
        %1539 = vmatprep.subr.bf16.mxu0 0
        %1540 = vmatpush1.bf16.msra.mxu0 %v1531
        %1541 = vmatprep.subr.bf16.mxu0 0
        %1542 = vmatpush1.bf16.msra.mxu0 0
        %1543 = vmatprep.subr.bf16.mxu0 0
        %1544 = vmatpush1.bf16.msra.mxu0 0
        %1545 = vmatprep.subr.bf16.mxu0 0
        %1546 = vmatpush1.bf16.msra.mxu0 0
        %1547 = vmatprep.subr.bf16.mxu0 0
        %1548 = vmatpush1.bf16.msra.mxu0 0
        %1549 = vmatprep.subr.bf16.mxu0 0
        %1550 = vmatpush1.bf16.msra.mxu0 0
        %1551 = vmatprep.subr.bf16.mxu0 0
        %1552 = vmatpush1.bf16.msra.mxu0 0
        %1553 = vmatprep.subr.bf16.mxu0 0
        %1554 = vmatpush1.bf16.msra.mxu0 0
        %1555 = vmatprep.subr.bf16.mxu0 0
        %1556 = vmatpush1.bf16.msra.mxu0 0
        %1557 = vmatprep.subr.bf16.mxu0 0
        %1558 = vmatpush1.bf16.msra.mxu0 0
        %1559 = vmatprep.subr.bf16.mxu0 0
        %1560 = vmatpush1.bf16.msra.mxu0 0
        %1561 = vmatprep.subr.bf16.mxu0 0
        %1562 = vmatpush1.bf16.msra.mxu0 0
        %1563 = vmatprep.subr.bf16.mxu0 0
        %1564 = vmatpush1.bf16.msra.mxu0 0
        %1565 = vmatprep.subr.bf16.mxu0 0
        %1566 = vmatpush1.bf16.msra.mxu0 0
        %1567 = vmatprep.subr.bf16.mxu0 0
        %1568 = vmatpush1.bf16.msra.mxu0 0
        %1569 = vmatprep.mubr.bf16.mxu0 0
        %1570 = vmatmul.mubr.bf16.gmra.mrb[0].mxu0 %v1535
        %v1571 = vpop.f32.mrb[0].mxu0
        %v1572 = vadd.f32 0.0, %v1571
        %v1573 = vpop.f32.mrb[0].mxu0
        %v1574 = vpop.f32.mrb[0].mxu0
        %v1575 = vpop.f32.mrb[0].mxu0
        %1576 = vdwg.mxu0
        %v1581 = vunpack.c.l.b16 %v1510
        %v1582 = vunpack.c.l.b16 %v1511
        %v1583 = vunpack.c.l.b16 %v1512
        %v1584 = vunpack.c.l.b16 %v1513
        %v1585 = vpack.c.b16 %v1582, %v1581
        %v1586 = vpack.c.b16 %v1584, %v1583
        %v1590 = vsel %vm1051, %v1503, 0
        %1592 = vmatprep.subr.bf16.mxu0 0
        %1593 = vmatpush1.bf16.msra.mxu0 %v1585
        %1594 = vmatprep.subr.bf16.mxu0 0
        %1595 = vmatpush1.bf16.msra.mxu0 %v1586
        %1596 = vmatprep.subr.bf16.mxu0 0
        %1597 = vmatpush1.bf16.msra.mxu0 0
        %1598 = vmatprep.subr.bf16.mxu0 0
        %1599 = vmatpush1.bf16.msra.mxu0 0
        %1600 = vmatprep.subr.bf16.mxu0 0
        %1601 = vmatpush1.bf16.msra.mxu0 0
        %1602 = vmatprep.subr.bf16.mxu0 0
        %1603 = vmatpush1.bf16.msra.mxu0 0
        %1604 = vmatprep.subr.bf16.mxu0 0
        %1605 = vmatpush1.bf16.msra.mxu0 0
        %1606 = vmatprep.subr.bf16.mxu0 0
        %1607 = vmatpush1.bf16.msra.mxu0 0
        %1608 = vmatprep.subr.bf16.mxu0 0
        %1609 = vmatpush1.bf16.msra.mxu0 0
        %1610 = vmatprep.subr.bf16.mxu0 0
        %1611 = vmatpush1.bf16.msra.mxu0 0
        %1612 = vmatprep.subr.bf16.mxu0 0
        %1613 = vmatpush1.bf16.msra.mxu0 0
        %1614 = vmatprep.subr.bf16.mxu0 0
        %1615 = vmatpush1.bf16.msra.mxu0 0
        %1616 = vmatprep.subr.bf16.mxu0 0
        %1617 = vmatpush1.bf16.msra.mxu0 0
        %1618 = vmatprep.subr.bf16.mxu0 0
        %1619 = vmatpush1.bf16.msra.mxu0 0
        %1620 = vmatprep.subr.bf16.mxu0 0
        %1621 = vmatpush1.bf16.msra.mxu0 0
        %1622 = vmatprep.subr.bf16.mxu0 0
        %1623 = vmatpush1.bf16.msra.mxu0 0
        %1624 = vmatprep.mubr.bf16.mxu0 0
        %1625 = vmatmul.mubr.bf16.gmra.mrb[0].mxu0 %v1590
        %v1626 = vpop.f32.mrb[0].mxu0
        %v1627 = vadd.f32 0.0, %v1626
        %v1628 = vpop.f32.mrb[0].mxu0
        %v1629 = vpop.f32.mrb[0].mxu0
        %v1630 = vpop.f32.mrb[0].mxu0
        %1631 = vdwg.mxu0
        %v1636 = vunpack.c.l.b16 %v1514
        %v1637 = vunpack.c.l.b16 %v1515
        %v1638 = vunpack.c.l.b16 %v1516
        %v1639 = vunpack.c.l.b16 %v1517
        %v1640 = vpack.c.b16 %v1637, %v1636
        %v1641 = vpack.c.b16 %v1639, %v1638
        %v1645 = vsel %vm1051, %v1504, 0
        %1647 = vmatprep.subr.bf16.mxu0 0
        %1648 = vmatpush1.bf16.msra.mxu0 %v1640
        %1649 = vmatprep.subr.bf16.mxu0 0
        %1650 = vmatpush1.bf16.msra.mxu0 %v1641
        %1651 = vmatprep.subr.bf16.mxu0 0
        %1652 = vmatpush1.bf16.msra.mxu0 0
        %1653 = vmatprep.subr.bf16.mxu0 0
        %1654 = vmatpush1.bf16.msra.mxu0 0
        %1655 = vmatprep.subr.bf16.mxu0 0
        %1656 = vmatpush1.bf16.msra.mxu0 0
        %1657 = vmatprep.subr.bf16.mxu0 0
        %1658 = vmatpush1.bf16.msra.mxu0 0
        %1659 = vmatprep.subr.bf16.mxu0 0
        %1660 = vmatpush1.bf16.msra.mxu0 0
        %1661 = vmatprep.subr.bf16.mxu0 0
        %1662 = vmatpush1.bf16.msra.mxu0 0
        %1663 = vmatprep.subr.bf16.mxu0 0
        %1664 = vmatpush1.bf16.msra.mxu0 0
        %1665 = vmatprep.subr.bf16.mxu0 0
        %1666 = vmatpush1.bf16.msra.mxu0 0
        %1667 = vmatprep.subr.bf16.mxu0 0
        %1668 = vmatpush1.bf16.msra.mxu0 0
        %1669 = vmatprep.subr.bf16.mxu0 0
        %1670 = vmatpush1.bf16.msra.mxu0 0
        %1671 = vmatprep.subr.bf16.mxu0 0
        %1672 = vmatpush1.bf16.msra.mxu0 0
        %1673 = vmatprep.subr.bf16.mxu0 0
        %1674 = vmatpush1.bf16.msra.mxu0 0
        %1675 = vmatprep.subr.bf16.mxu0 0
        %1676 = vmatpush1.bf16.msra.mxu0 0
        %1677 = vmatprep.subr.bf16.mxu0 0
        %1678 = vmatpush1.bf16.msra.mxu0 0
        %1679 = vmatprep.mubr.bf16.mxu0 0
        %1680 = vmatmul.mubr.bf16.gmra.mrb[0].mxu0 %v1645
        %v1681 = vpop.f32.mrb[0].mxu0
        %v1682 = vadd.f32 0.0, %v1681
        %v1683 = vpop.f32.mrb[0].mxu0
        %v1684 = vpop.f32.mrb[0].mxu0
        %v1685 = vpop.f32.mrb[0].mxu0
        %1686 = vdwg.mxu0
        %v1691 = vunpack.c.l.b16 %v1518
        %v1692 = vunpack.c.l.b16 %v1519
        %v1693 = vunpack.c.l.b16 %v1520
        %v1694 = vunpack.c.l.b16 %v1521
        %v1695 = vpack.c.b16 %v1692, %v1691
        %v1696 = vpack.c.b16 %v1694, %v1693
        %v1700 = vsel %vm1051, %v1505, 0
        %1702 = vmatprep.subr.bf16.mxu0 0
        %1703 = vmatpush1.bf16.msra.mxu0 %v1695
        %1704 = vmatprep.subr.bf16.mxu0 0
        %1705 = vmatpush1.bf16.msra.mxu0 %v1696
        %1706 = vmatprep.subr.bf16.mxu0 0
        %1707 = vmatpush1.bf16.msra.mxu0 0
        %1708 = vmatprep.subr.bf16.mxu0 0
        %1709 = vmatpush1.bf16.msra.mxu0 0
        %1710 = vmatprep.subr.bf16.mxu0 0
        %1711 = vmatpush1.bf16.msra.mxu0 0
        %1712 = vmatprep.subr.bf16.mxu0 0
        %1713 = vmatpush1.bf16.msra.mxu0 0
        %1714 = vmatprep.subr.bf16.mxu0 0
        %1715 = vmatpush1.bf16.msra.mxu0 0
        %1716 = vmatprep.subr.bf16.mxu0 0
        %1717 = vmatpush1.bf16.msra.mxu0 0
        %1718 = vmatprep.subr.bf16.mxu0 0
        %1719 = vmatpush1.bf16.msra.mxu0 0
        %1720 = vmatprep.subr.bf16.mxu0 0
        %1721 = vmatpush1.bf16.msra.mxu0 0
        %1722 = vmatprep.subr.bf16.mxu0 0
        %1723 = vmatpush1.bf16.msra.mxu0 0
        %1724 = vmatprep.subr.bf16.mxu0 0
        %1725 = vmatpush1.bf16.msra.mxu0 0
        %1726 = vmatprep.subr.bf16.mxu0 0
        %1727 = vmatpush1.bf16.msra.mxu0 0
        %1728 = vmatprep.subr.bf16.mxu0 0
        %1729 = vmatpush1.bf16.msra.mxu0 0
        %1730 = vmatprep.subr.bf16.mxu0 0
        %1731 = vmatpush1.bf16.msra.mxu0 0
        %1732 = vmatprep.subr.bf16.mxu0 0
        %1733 = vmatpush1.bf16.msra.mxu0 0
        %1734 = vmatprep.mubr.bf16.mxu0 0
        %1735 = vmatmul.mubr.bf16.gmra.mrb[0].mxu0 %v1700
        %v1736 = vpop.f32.mrb[0].mxu0
        %v1737 = vadd.f32 0.0, %v1736
        %v1738 = vpop.f32.mrb[0].mxu0
        %v1739 = vpop.f32.mrb[0].mxu0
        %v1740 = vpop.f32.mrb[0].mxu0
        %1741 = vdwg.mxu0
        %v1742 = vadd.f32 %v1572, %v1627
        %v1743 = vadd.f32 %v1742, %v1682
        %v1744 = vadd.f32 %v1743, %v1737
        %v1745 = vlaneseq
        %v1746 = vshrl.u32 %v1745, 7
        %v1747 = vsub.s32 0, %v1746
        %v1748 = vrot.slane %v598, %v1747
        %v1749 = vadd.f32 %v1744, %v1748
        %v1750 = vadd.f32 %v597, %v1749
        %1751 = vadd.xlane.f32.xlu0 %v1750
        %v1752 = vpop.xlane.xlu0 %1751
        %v1753 = vrcp.pop 128.0
        %v1754 = vmul.f32 %v1752, %v1753
        %v1755 = vsub.f32 %v1750, %v1754
        %v1756 = vmul.f32 %v1755, %v1755
        %1757 = vadd.xlane.f32.xlu0 %v1756
        %v1758 = vpop.xlane.xlu0 %1757
        %v1759 = vmul.f32 %v1758, %v1753
        %v1760 = vadd.f32 %v1759, 1e-12
        %v1761 = vrsqrt.pop %v1760
        %v1762 = vmul.f32 %v1755, %v1761
        %v1763 = vlaneseq
        %v1764 = vshrl.u32 %v1763, 7
        %v1765 = vsub.s32 2, %v1764
        %v1766 = vrot.slane %v598, %v1765
        %v1767 = vmul.f32 %v1762, %v1766
        %v1768 = vlaneseq
        %v1769 = vshrl.u32 %v1768, 7
        %v1770 = vsub.s32 3, %v1769
        %v1771 = vrot.slane %v598, %v1770
        %v1772 = vadd.f32 %v1767, %v1771
        %v1773 = vpack.c.bf16 %v1772, %v1772
        %v1774 = vld [vmem:[%s552] sm:$0xff]
        %v1775 = vld [vmem:[%s552 + $0x8] sm:$0xff]
        %v1776 = vld [vmem:[%s552 + $0x10] sm:$0xff]
        %v1777 = vld [vmem:[%s552 + $0x18] sm:$0xff]
        %v1778 = vld [vmem:[%s552 + $0x20] sm:$0xff]
        %v1779 = vld [vmem:[%s552 + $0x28] sm:$0xff]
        %v1780 = vld [vmem:[%s552 + $0x30] sm:$0xff]
        %v1781 = vld [vmem:[%s552 + $0x38] sm:$0xff]
        %v1782 = vld [vmem:[%s552 + $0x40] sm:$0xff]
        %v1783 = vld [vmem:[%s552 + $0x48] sm:$0xff]
        %v1784 = vld [vmem:[%s552 + $0x50] sm:$0xff]
        %v1785 = vld [vmem:[%s552 + $0x58] sm:$0xff]
        %v1786 = vld [vmem:[%s552 + $0x60] sm:$0xff]
        %v1787 = vld [vmem:[%s552 + $0x68] sm:$0xff]
        %v1788 = vld [vmem:[%s552 + $0x70] sm:$0xff]
        %v1789 = vld [vmem:[%s552 + $0x78] sm:$0xff]
        %v1790 = vld [vmem:[%s556] sm:$0x3]
        %v1792 = vlaneseq
        %v1793 = vshrl.u32 %v1792, 7
        %v1794 = vsub.s32 0, %v1793
        %v1795 = vrot.slane %v1790, %v1794
        %v1796 = vlaneseq
        %v1797 = vshrl.u32 %v1796, 7
        %v1798 = vsub.s32 1, %v1797
        %v1799 = vrot.slane %v1790, %v1798
        %v1818 = vunpack.c.l.b16 %v1774
        %v1819 = vunpack.c.h.b16 %v1774
        %v1820 = vunpack.c.l.b16 %v1775
        %v1821 = vunpack.c.h.b16 %v1775
        %v1822 = vunpack.c.l.b16 %v1776
        %v1823 = vunpack.c.h.b16 %v1776
        %v1824 = vunpack.c.l.b16 %v1777
        %v1825 = vunpack.c.h.b16 %v1777
        %v1826 = vunpack.c.l.b16 %v1778
        %v1827 = vunpack.c.h.b16 %v1778
        %v1828 = vunpack.c.l.b16 %v1779
        %v1829 = vunpack.c.h.b16 %v1779
        %v1830 = vunpack.c.l.b16 %v1780
        %v1831 = vunpack.c.h.b16 %v1780
        %v1832 = vunpack.c.l.b16 %v1781
        %v1833 = vunpack.c.h.b16 %v1781
        %v1834 = vunpack.c.l.b16 %v1782
        %v1835 = vunpack.c.h.b16 %v1782
        %v1836 = vunpack.c.l.b16 %v1783
        %v1837 = vunpack.c.h.b16 %v1783
        %v1838 = vunpack.c.l.b16 %v1784
        %v1839 = vunpack.c.h.b16 %v1784
        %v1840 = vunpack.c.l.b16 %v1785
        %v1841 = vunpack.c.h.b16 %v1785
        %v1842 = vunpack.c.l.b16 %v1786
        %v1843 = vunpack.c.h.b16 %v1786
        %v1844 = vunpack.c.l.b16 %v1787
        %v1845 = vunpack.c.h.b16 %v1787
        %v1846 = vunpack.c.l.b16 %v1788
        %v1847 = vunpack.c.h.b16 %v1788
        %v1848 = vunpack.c.l.b16 %v1789
        %v1849 = vunpack.c.h.b16 %v1789
        %v1850 = vpack.c.b16 %v1820, %v1818
        %v1851 = vpack.c.b16 %v1821, %v1819
        %v1852 = vpack.c.b16 %v1824, %v1822
        %v1853 = vpack.c.b16 %v1825, %v1823
        %v1854 = vpack.c.b16 %v1828, %v1826
        %v1855 = vpack.c.b16 %v1829, %v1827
        %v1856 = vpack.c.b16 %v1832, %v1830
        %v1857 = vpack.c.b16 %v1833, %v1831
        %v1858 = vpack.c.b16 %v1836, %v1834
        %v1859 = vpack.c.b16 %v1837, %v1835
        %v1860 = vpack.c.b16 %v1840, %v1838
        %v1861 = vpack.c.b16 %v1841, %v1839
        %v1862 = vpack.c.b16 %v1844, %v1842
        %v1863 = vpack.c.b16 %v1845, %v1843
        %v1864 = vpack.c.b16 %v1848, %v1846
        %v1865 = vpack.c.b16 %v1849, %v1847
        %1882 = vmatprep.subr.bf16.mxu0 %v1851
        %1883 = vmatpush1.bf16.msra.mxu0 %v1850
        %1884 = vmatprep.subr.bf16.mxu0 %v1853
        %1885 = vmatpush1.bf16.msra.mxu0 %v1852
        %1886 = vmatprep.subr.bf16.mxu0 %v1855
        %1887 = vmatpush1.bf16.msra.mxu0 %v1854
        %1888 = vmatprep.subr.bf16.mxu0 %v1857
        %1889 = vmatpush1.bf16.msra.mxu0 %v1856
        %1890 = vmatprep.subr.bf16.mxu0 %v1859
        %1891 = vmatpush1.bf16.msra.mxu0 %v1858
        %1892 = vmatprep.subr.bf16.mxu0 %v1861
        %1893 = vmatpush1.bf16.msra.mxu0 %v1860
        %1894 = vmatprep.subr.bf16.mxu0 %v1863
        %1895 = vmatpush1.bf16.msra.mxu0 %v1862
        %1896 = vmatprep.subr.bf16.mxu0 %v1865
        %1897 = vmatpush1.bf16.msra.mxu0 %v1864
        %1898 = vmatprep.subr.bf16.mxu0 0
        %1899 = vmatpush1.bf16.msra.mxu0 0
        %1900 = vmatprep.subr.bf16.mxu0 0
        %1901 = vmatpush1.bf16.msra.mxu0 0
        %1902 = vmatprep.subr.bf16.mxu0 0
        %1903 = vmatpush1.bf16.msra.mxu0 0
        %1904 = vmatprep.subr.bf16.mxu0 0
        %1905 = vmatpush1.bf16.msra.mxu0 0
        %1906 = vmatprep.subr.bf16.mxu0 0
        %1907 = vmatpush1.bf16.msra.mxu0 0
        %1908 = vmatprep.subr.bf16.mxu0 0
        %1909 = vmatpush1.bf16.msra.mxu0 0
        %1910 = vmatprep.subr.bf16.mxu0 0
        %1911 = vmatpush1.bf16.msra.mxu0 0
        %1912 = vmatprep.subr.bf16.mxu0 0
        %1913 = vmatpush1.bf16.msra.mxu0 0
        %1914 = vmatprep.mubr.bf16.mxu0 0
        %1915 = vmatmul.mubr.bf16.gmra.mrb[0].mxu0 %v1773
        %v1916 = vpop.f32.mrb[0].mxu0
        %v1917 = vadd.f32 %v1795, %v1916
        %v1918 = vpop.f32.mrb[0].mxu0
        %v1919 = vadd.f32 %v1799, %v1918
        %v1920 = vpop.f32.mrb[0].mxu0
        %v1921 = vpop.f32.mrb[0].mxu0
        %1922 = vdwg.mxu0
        %v1923 = vmul.f32 %v1917, 0.5
        %v1924 = vmul.f32 %v1919, 0.5
        %v1925 = vmul.f32 %v1917, 0.70710677
        %v1926 = vmul.f32 %v1919, 0.70710677
        %v1927 = vand.u32 2147483647, %v1925
        %v1928 = vand.u32 2147483647, %v1926
        %v1929 = vmul.f32 %v1927, 0.3275911
        %v1930 = vmul.f32 %v1928, 0.3275911
        %v1931 = vadd.f32 %v1929, 1.0
        %v1932 = vadd.f32 %v1930, 1.0
        %v1933 = vrcp.pop %v1931
        %v1934 = vmul.f32 1.0, %v1933
        %v1935 = vrcp.pop %v1932
        %v1936 = vmul.f32 1.0, %v1935
        %v1937 = vmul.f32 %v1934, 1.0614054
        %v1938 = vmul.f32 %v1936, 1.0614054
        %v1939 = vadd.f32 %v1937, -1.4531521
        %v1940 = vadd.f32 %v1938, -1.4531521
        %v1941 = vmul.f32 %v1934, %v1939
        %v1942 = vmul.f32 %v1936, %v1940
        %v1943 = vadd.f32 %v1941, 1.4214138
        %v1944 = vadd.f32 %v1942, 1.4214138
        %v1945 = vmul.f32 %v1934, %v1943
        %v1946 = vmul.f32 %v1936, %v1944
        %v1947 = vadd.f32 %v1945, -0.28449672
        %v1948 = vadd.f32 %v1946, -0.28449672
        %v1949 = vmul.f32 %v1934, %v1947
        %v1950 = vmul.f32 %v1936, %v1948
        %v1951 = vadd.f32 %v1949, 0.2548296
        %v1952 = vadd.f32 %v1950, 0.2548296
        %v1953 = vmul.f32 %v1934, %v1951
        %v1954 = vmul.f32 %v1936, %v1952
        %v1955 = vsub.f32 0.0, %v1925
        %v1956 = vsub.f32 0.0, %v1926
        %v1957 = vmul.f32 %v1955, %v1925
        %v1958 = vmul.f32 %v1956, %v1926
        %v1959 = vmul.f32 %v1957, 1.442695
        %v1960 = vpow.pop %v1959
        %v1961 = vmul.f32 %v1958, 1.442695
        %v1962 = vpow.pop %v1961
        %v1963 = vmul.f32 %v1953, %v1960
        %v1964 = vmul.f32 %v1954, %v1962
        %v1965 = vsub.f32 1.0, %v1963
        %v1966 = vsub.f32 1.0, %v1964
        %vm1967 = vcmp.ge.f32.partialorder %v1925, 0.0
        %vm1968 = vcmp.ge.f32.partialorder %v1926, 0.0
        %v1969 = vsub.f32 0.0, %v1965
        %v1970 = vsub.f32 0.0, %v1966
        %v1971 = vsel %vm1967, %v1965, %v1969
        %v1972 = vsel %vm1968, %v1966, %v1970
        %v1973 = vadd.f32 %v1971, 1.0
        %v1974 = vadd.f32 %v1972, 1.0
        %v1975 = vmul.f32 %v1923, %v1973
        %v1976 = vmul.f32 %v1924, %v1974
        %v1977 = vpack.c.bf16 %v1975, %v1975
        %v1978 = vpack.c.bf16 %v1976, %v1976
        %v1979 = vld [vmem:[%s561] sm:$0xf]
        %v1980 = vld [vmem:[%s561 + $0x4] sm:$0xf]
        %v1981 = vld [vmem:[%s561 + $0x8] sm:$0xf]
        %v1982 = vld [vmem:[%s561 + $0xc] sm:$0xf]
        %v1983 = vld [vmem:[%s561 + $0x10] sm:$0xf]
        %v1984 = vld [vmem:[%s561 + $0x14] sm:$0xf]
        %v1985 = vld [vmem:[%s561 + $0x18] sm:$0xf]
        %v1986 = vld [vmem:[%s561 + $0x1c] sm:$0xf]
        %v1987 = vld [vmem:[%s561 + $0x20] sm:$0xf]
        %v1988 = vld [vmem:[%s561 + $0x24] sm:$0xf]
        %v1989 = vld [vmem:[%s561 + $0x28] sm:$0xf]
        %v1990 = vld [vmem:[%s561 + $0x2c] sm:$0xf]
        %v1991 = vld [vmem:[%s561 + $0x30] sm:$0xf]
        %v1992 = vld [vmem:[%s561 + $0x34] sm:$0xf]
        %v1993 = vld [vmem:[%s561 + $0x38] sm:$0xf]
        %v1994 = vld [vmem:[%s561 + $0x3c] sm:$0xf]
        %v1995 = vld [vmem:[%s561 + $0x40] sm:$0xf]
        %v1996 = vld [vmem:[%s561 + $0x44] sm:$0xf]
        %v1997 = vld [vmem:[%s561 + $0x48] sm:$0xf]
        %v1998 = vld [vmem:[%s561 + $0x4c] sm:$0xf]
        %v1999 = vld [vmem:[%s561 + $0x50] sm:$0xf]
        %v2000 = vld [vmem:[%s561 + $0x54] sm:$0xf]
        %v2001 = vld [vmem:[%s561 + $0x58] sm:$0xf]
        %v2002 = vld [vmem:[%s561 + $0x5c] sm:$0xf]
        %v2003 = vld [vmem:[%s561 + $0x60] sm:$0xf]
        %v2004 = vld [vmem:[%s561 + $0x64] sm:$0xf]
        %v2005 = vld [vmem:[%s561 + $0x68] sm:$0xf]
        %v2006 = vld [vmem:[%s561 + $0x6c] sm:$0xf]
        %v2007 = vld [vmem:[%s561 + $0x70] sm:$0xf]
        %v2008 = vld [vmem:[%s561 + $0x74] sm:$0xf]
        %v2009 = vld [vmem:[%s561 + $0x78] sm:$0xf]
        %v2010 = vld [vmem:[%s561 + $0x7c] sm:$0xf]
        %v2011 = vlaneseq
        %v2012 = vshrl.u32 %v2011, 7
        %v2013 = vsub.s32 1, %v2012
        %v2014 = vrot.slane %v598, %v2013
        %v2047 = vunpack.c.l.b16 %v1979
        %v2048 = vunpack.c.l.b16 %v1980
        %v2049 = vunpack.c.l.b16 %v1981
        %v2050 = vunpack.c.l.b16 %v1982
        %v2051 = vunpack.c.l.b16 %v1983
        %v2052 = vunpack.c.l.b16 %v1984
        %v2053 = vunpack.c.l.b16 %v1985
        %v2054 = vunpack.c.l.b16 %v1986
        %v2055 = vunpack.c.l.b16 %v1987
        %v2056 = vunpack.c.l.b16 %v1988
        %v2057 = vunpack.c.l.b16 %v1989
        %v2058 = vunpack.c.l.b16 %v1990
        %v2059 = vunpack.c.l.b16 %v1991
        %v2060 = vunpack.c.l.b16 %v1992
        %v2061 = vunpack.c.l.b16 %v1993
        %v2062 = vunpack.c.l.b16 %v1994
        %v2063 = vunpack.c.l.b16 %v1995
        %v2064 = vunpack.c.l.b16 %v1996
        %v2065 = vunpack.c.l.b16 %v1997
        %v2066 = vunpack.c.l.b16 %v1998
        %v2067 = vunpack.c.l.b16 %v1999
        %v2068 = vunpack.c.l.b16 %v2000
        %v2069 = vunpack.c.l.b16 %v2001
        %v2070 = vunpack.c.l.b16 %v2002
        %v2071 = vunpack.c.l.b16 %v2003
        %v2072 = vunpack.c.l.b16 %v2004
        %v2073 = vunpack.c.l.b16 %v2005
        %v2074 = vunpack.c.l.b16 %v2006
        %v2075 = vunpack.c.l.b16 %v2007
        %v2076 = vunpack.c.l.b16 %v2008
        %v2077 = vunpack.c.l.b16 %v2009
        %v2078 = vunpack.c.l.b16 %v2010
        %v2079 = vpack.c.b16 %v2048, %v2047
        %v2080 = vpack.c.b16 %v2050, %v2049
        %v2081 = vpack.c.b16 %v2052, %v2051
        %v2082 = vpack.c.b16 %v2054, %v2053
        %v2083 = vpack.c.b16 %v2056, %v2055
        %v2084 = vpack.c.b16 %v2058, %v2057
        %v2085 = vpack.c.b16 %v2060, %v2059
        %v2086 = vpack.c.b16 %v2062, %v2061
        %v2087 = vpack.c.b16 %v2064, %v2063
        %v2088 = vpack.c.b16 %v2066, %v2065
        %v2089 = vpack.c.b16 %v2068, %v2067
        %v2090 = vpack.c.b16 %v2070, %v2069
        %v2091 = vpack.c.b16 %v2072, %v2071
        %v2092 = vpack.c.b16 %v2074, %v2073
        %v2093 = vpack.c.b16 %v2076, %v2075
        %v2094 = vpack.c.b16 %v2078, %v2077
        %2111 = vmatprep.subr.bf16.mxu0 0
        %2112 = vmatpush1.bf16.msra.mxu0 %v2079
        %2113 = vmatprep.subr.bf16.mxu0 0
        %2114 = vmatpush1.bf16.msra.mxu0 %v2080
        %2115 = vmatprep.subr.bf16.mxu0 0
        %2116 = vmatpush1.bf16.msra.mxu0 %v2081
        %2117 = vmatprep.subr.bf16.mxu0 0
        %2118 = vmatpush1.bf16.msra.mxu0 %v2082
        %2119 = vmatprep.subr.bf16.mxu0 0
        %2120 = vmatpush1.bf16.msra.mxu0 %v2083
        %2121 = vmatprep.subr.bf16.mxu0 0
        %2122 = vmatpush1.bf16.msra.mxu0 %v2084
        %2123 = vmatprep.subr.bf16.mxu0 0
        %2124 = vmatpush1.bf16.msra.mxu0 %v2085
        %2125 = vmatprep.subr.bf16.mxu0 0
        %2126 = vmatpush1.bf16.msra.mxu0 %v2086
        %2127 = vmatprep.subr.bf16.mxu0 0
        %2128 = vmatpush1.bf16.msra.mxu0 %v2087
        %2129 = vmatprep.subr.bf16.mxu0 0
        %2130 = vmatpush1.bf16.msra.mxu0 %v2088
        %2131 = vmatprep.subr.bf16.mxu0 0
        %2132 = vmatpush1.bf16.msra.mxu0 %v2089
        %2133 = vmatprep.subr.bf16.mxu0 0
        %2134 = vmatpush1.bf16.msra.mxu0 %v2090
        %2135 = vmatprep.subr.bf16.mxu0 0
        %2136 = vmatpush1.bf16.msra.mxu0 %v2091
        %2137 = vmatprep.subr.bf16.mxu0 0
        %2138 = vmatpush1.bf16.msra.mxu0 %v2092
        %2139 = vmatprep.subr.bf16.mxu0 0
        %2140 = vmatpush1.bf16.msra.mxu0 %v2093
        %2141 = vmatprep.subr.bf16.mxu0 0
        %2142 = vmatpush1.bf16.msra.mxu0 %v2094
        %2143 = vmatprep.mubr.bf16.mxu0 %v1978
        %2144 = vmatmul.mubr.bf16.gmra.mrb[0].mxu0 %v1977
        %v2145 = vpop.f32.mrb[0].mxu0
        %v2146 = vadd.f32 %v2014, %v2145
        %v2147 = vpop.f32.mrb[0].mxu0
        %v2148 = vpop.f32.mrb[0].mxu0
        %v2149 = vpop.f32.mrb[0].mxu0
        %2150 = vdwg.mxu0
        %v2151 = vadd.f32 %v1772, %v2146
        %2152 = vadd.xlane.f32.xlu0 %v2151
        %v2153 = vpop.xlane.xlu0 %2152
        %v2154 = vmul.f32 %v2153, %v1753
        %v2155 = vsub.f32 %v2151, %v2154
        %v2156 = vmul.f32 %v2155, %v2155
        %2157 = vadd.xlane.f32.xlu0 %v2156
        %v2158 = vpop.xlane.xlu0 %2157
        %v2159 = vmul.f32 %v2158, %v1753
        %v2160 = vadd.f32 %v2159, 1e-12
        %v2161 = vrsqrt.pop %v2160
        %v2162 = vmul.f32 %v2155, %v2161
        %v2163 = vlaneseq
        %v2164 = vshrl.u32 %v2163, 7
        %v2165 = vsub.s32 4, %v2164
        %v2166 = vrot.slane %v598, %v2165
        %v2167 = vmul.f32 %v2162, %v2166
        %v2168 = vlaneseq
        %v2169 = vshrl.u32 %v2168, 7
        %v2170 = vsub.s32 5, %v2169
        %v2171 = vrot.slane %v598, %v2170
        %v2172 = vadd.f32 %v2167, %v2171
        %2173 = vst [vmem:[#allocation2] sm:$0xff] %v2172
        %p2174 = scmp.eq.s32.totalorder %s31, 1
        // Predicated region
        $region73: #{tpu_custom_call.1} parent=67 // pred_check
          %p2175 = pneg %p2174
        $region74: #{tpu_custom_call.1} parent=67 // pred_check_branch
          %2177 = sbr.rel (%p2175) target = $region76
        $region75: #{tpu_custom_call.1} parent=67 // pred_region
          %v2178 = vpack.c.bf16 %v2172, %v2172
          %v2179 = vld [vmem:[%s10] sm:$0xf]
          %v2180 = vld [vmem:[%s10 + $0x4] sm:$0xf]
          %v2181 = vld [vmem:[%s10 + $0x8] sm:$0xf]
          %v2182 = vld [vmem:[%s10 + $0xc] sm:$0xf]
          %v2183 = vld [vmem:[%s10 + $0x10] sm:$0xf]
          %v2184 = vld [vmem:[%s10 + $0x14] sm:$0xf]
          %v2185 = vld [vmem:[%s10 + $0x18] sm:$0xf]
          %v2186 = vld [vmem:[%s10 + $0x1c] sm:$0xf]
          %v2187 = vld [vmem:[%s10 + $0x20] sm:$0xf]
          %v2188 = vld [vmem:[%s10 + $0x24] sm:$0xf]
          %v2189 = vld [vmem:[%s10 + $0x28] sm:$0xf]
          %v2190 = vld [vmem:[%s10 + $0x2c] sm:$0xf]
          %v2191 = vld [vmem:[%s10 + $0x30] sm:$0xf]
          %v2192 = vld [vmem:[%s10 + $0x34] sm:$0xf]
          %v2193 = vld [vmem:[%s10 + $0x38] sm:$0xf]
          %v2194 = vld [vmem:[%s10 + $0x3c] sm:$0xf]
          %v2195 = vld [vmem:[%s11] sm:$0x1]
          %v2197 = vlaneseq
          %v2198 = vshrl.u32 %v2197, 7
          %v2199 = vsub.s32 0, %v2198
          %v2200 = vrot.slane %v2195, %v2199
          %v2218 = vunpack.c.l.b16 %v2179
          %v2219 = vunpack.c.l.b16 %v2180
          %v2220 = vunpack.c.l.b16 %v2181
          %v2221 = vunpack.c.l.b16 %v2182
          %v2222 = vunpack.c.l.b16 %v2183
          %v2223 = vunpack.c.l.b16 %v2184
          %v2224 = vunpack.c.l.b16 %v2185
          %v2225 = vunpack.c.l.b16 %v2186
          %v2226 = vunpack.c.l.b16 %v2187
          %v2227 = vunpack.c.l.b16 %v2188
          %v2228 = vunpack.c.l.b16 %v2189
          %v2229 = vunpack.c.l.b16 %v2190
          %v2230 = vunpack.c.l.b16 %v2191
          %v2231 = vunpack.c.l.b16 %v2192
          %v2232 = vunpack.c.l.b16 %v2193
          %v2233 = vunpack.c.l.b16 %v2194
          %v2234 = vpack.c.b16 %v2219, %v2218
          %v2235 = vpack.c.b16 %v2221, %v2220
          %v2236 = vpack.c.b16 %v2223, %v2222
          %v2237 = vpack.c.b16 %v2225, %v2224
          %v2238 = vpack.c.b16 %v2227, %v2226
          %v2239 = vpack.c.b16 %v2229, %v2228
          %v2240 = vpack.c.b16 %v2231, %v2230
          %v2241 = vpack.c.b16 %v2233, %v2232
          %2250 = vmatprep.subr.bf16.mxu0 0
          %2251 = vmatpush1.bf16.msra.mxu0 %v2234
          %2252 = vmatprep.subr.bf16.mxu0 0
          %2253 = vmatpush1.bf16.msra.mxu0 %v2235
          %2254 = vmatprep.subr.bf16.mxu0 0
          %2255 = vmatpush1.bf16.msra.mxu0 %v2236
          %2256 = vmatprep.subr.bf16.mxu0 0
          %2257 = vmatpush1.bf16.msra.mxu0 %v2237
          %2258 = vmatprep.subr.bf16.mxu0 0
          %2259 = vmatpush1.bf16.msra.mxu0 %v2238
          %2260 = vmatprep.subr.bf16.mxu0 0
          %2261 = vmatpush1.bf16.msra.mxu0 %v2239
          %2262 = vmatprep.subr.bf16.mxu0 0
          %2263 = vmatpush1.bf16.msra.mxu0 %v2240
          %2264 = vmatprep.subr.bf16.mxu0 0
          %2265 = vmatpush1.bf16.msra.mxu0 %v2241
          %2266 = vmatprep.subr.bf16.mxu0 0
          %2267 = vmatpush1.bf16.msra.mxu0 0
          %2268 = vmatprep.subr.bf16.mxu0 0
          %2269 = vmatpush1.bf16.msra.mxu0 0
          %2270 = vmatprep.subr.bf16.mxu0 0
          %2271 = vmatpush1.bf16.msra.mxu0 0
          %2272 = vmatprep.subr.bf16.mxu0 0
          %2273 = vmatpush1.bf16.msra.mxu0 0
          %2274 = vmatprep.subr.bf16.mxu0 0
          %2275 = vmatpush1.bf16.msra.mxu0 0
          %2276 = vmatprep.subr.bf16.mxu0 0
          %2277 = vmatpush1.bf16.msra.mxu0 0
          %2278 = vmatprep.subr.bf16.mxu0 0
          %2279 = vmatpush1.bf16.msra.mxu0 0
          %2280 = vmatprep.subr.bf16.mxu0 0
          %2281 = vmatpush1.bf16.msra.mxu0 0
          %2282 = vmatprep.mubr.bf16.mxu0 0
          %2283 = vmatmul.mubr.bf16.gmra.mrb[0].mxu0 %v2178
          %v2284 = vpop.f32.mrb[0].mxu0
          %v2285 = vadd.f32 %v2200, %v2284
          %v2286 = vpop.f32.mrb[0].mxu0
          %v2287 = vpop.f32.mrb[0].mxu0
          %v2288 = vpop.f32.mrb[0].mxu0
          %2289 = vdwg.mxu0
          %2290 = vst [vmem:[%s526] sm:$0xff] %v2285
        $region76: #{tpu_custom_call.1} parent=67 // pred_fallthru
          _
        %s2291 = sand.u32 %s343, 1
        %s2292 = scalar_lea.sflag [#allocation4], %s2291
        %s2293 = sand.u32 %s343, 1
        %s2294 = smul.addr %s2293, 8
        %s2295 = scalar_lea.vmem [#allocation3], %s2294
        // Predicated region
        $region77: #{tpu_custom_call.1} parent=67 // pred_check
          %p2296 = pneg %p353
        $region78: #{tpu_custom_call.1} parent=67 // pred_check_branch
          %2298 = sbr.rel (%p2296) target = $region80
        $region79: #{tpu_custom_call.1} parent=67 // pred_region
          %s2300 = ssub.s32 128, 128
          %2301 = vsyncadd %s2292, %s2300
          %s2302 = smul.addr %s30, 128
          %s2303 = scalar_lea.hbm %s12, %s2302
          %s2305 = sshll.u32 %s2295, 4
          %s2306 = int_to_ptr.vmem [resolvable:$true] %s2305
          %2308 = dma.vmem_to_hbm [thread:$0]  %s2306, 128, %s2303, %s2292
        $region80: #{tpu_custom_call.1} parent=67 // pred_fallthru
          _
      $region68: #{tpu_custom_call.1} parent=5 // pred_fallthru
        _
      %p2309 = scmp.le.s32.totalorder 2, %s21
      // Predicated region
      $region81: #{tpu_custom_call.1} parent=5 // pred_check
        %p2310 = pneg %p2309
      $region82: #{tpu_custom_call.1} parent=5 // pred_check_branch
        %2312 = sbr.rel (%p2310) target = $region84
      $region83: #{tpu_custom_call.1} parent=5 // pred_region
        %s2313 = ssub.s32 %s21, 2
        // Predicated region
        $region85: #{tpu_custom_call.1} parent=83 // pred_check
          %p2314 = pneg %p359
        $region86: #{tpu_custom_call.1} parent=83 // pred_check_branch
          %2316 = sbr.rel (%p2314) target = $region88
        $region87: #{tpu_custom_call.1} parent=83 // pred_region
          %s2317 = sand.u32 %s344, 1
          %s2318 = scalar_lea.sflag [#allocation4], %s2317
          %s2319 = sand.u32 %s344, 1
          %s2320 = smul.addr %s2319, 8
          %s2321 = scalar_lea.vmem [#allocation3], %s2320
          %2322 = dma.done %s2318, 128
        $region88: #{tpu_custom_call.1} parent=83 // pred_fallthru
          _
      $region84: #{tpu_custom_call.1} parent=5 // pred_fallthru
        _
    $region6: #{tpu_custom_call.1} parent=1 // loop_footer
      %s25 = sadd.s32 1, %s21
    $region7: #{tpu_custom_call.1} parent=1 // loop_footer_branch
      %20 = sbr.rel target = $region3
    $region8: #{tpu_custom_call.1} parent=1 // loop_exit
      _
    %2323 = vsyncpa [#allocation4], 1
    %s2324 = scalar_lea.sflag [#allocation4], 1
    %2325 = vsyncpa %s2324, 1

</llo_original>
